<compile_context>
chip_gen: v7x
topology: tpu7x:2x2x1
jax: 0.10.0
libtpu: 0.0.40
codegen_flags: <defaults>
</compile_context>

<pallas_src>
import jax
import jax.numpy as jnp
from jax.experimental import pallas as pl
from jax.experimental.pallas import tpu as pltpu


# ----------------------------- configuration ------------------------------ #
BATCH = 2
SEQ_LEN = 16
D_MODEL = 768              # BERT hidden size (fixed by Conv1d(768, ...))
N_FILTERS = 64
KERNEL_SIZES = (3, 5, 7)   # small instantiation of list_kernel_sizes
N_CLASSES = 2
PAD = 1                    # Conv1d(..., padding=1)
LANE_OUT = 128             # lane-dense logits slab; logits live in [:, :N_CLASSES]
CHUNK_N = 256              # tap-major weight streamed in 256-wide column chunks


def _round_up(n, m):
    return (n + m - 1) // m * m


# ------------------------------ Pallas kernel ------------------------------ #
def _make_kernel(kernel_sizes, n_filters, batch, lp, lp_eff, t_out,
                 n_chunks, total_cols):
    # Column offset of each bank inside the tap-major weight / Y slab.
    offsets = []
    off = 0
    for ks in kernel_sizes:
        offsets.append(off)
        off += ks * n_filters

    def kernel(x_ref, w_ref, bias_ref, wl_ref, bl_ref, out_ref, y_acc):
        j = pl.program_id(0)

        # One deep-K matmul per 256-wide column chunk of the tap-major weight:
        #   Y[:, j*C:(j+1)*C] = X (M, D) @ W_chunk (D, C), f32 accumulation.
        # The Pallas pipeline prefetches chunk j+1's weight DMA under this
        # matmul, hiding most of the weight read.
        y_acc[j] = jnp.dot(x_ref[...], w_ref[...],
                           preferred_element_type=jnp.float32)

        # Epilogue on the last chunk: shifted adds per bank, bias + ReLU,
        # mask invalid rows, max-pool over time, lane-dense linear head.
        @pl.when(j == n_chunks - 1)
        def _():
            y = jnp.concatenate([y_acc[c] for c in range(n_chunks)], axis=-1)
            y = y.reshape(batch, lp, total_cols)           # (B, Lp, total)

            bias_all = bias_ref[...]                       # (1, n_conv*F) f32
            pooled = []
            for i, ks in enumerate(kernel_sizes):
                off_i = offsets[i]
                # conv_i[b, t, f] = sum_k Y[b, t + k, off_i + k*F + f]
                acc = y[:, 0:t_out, off_i:off_i + n_filters]
                for k in range(1, ks):
                    c0 = off_i + k * n_filters
                    acc = acc + y[:, k:k + t_out, c0:c0 + n_filters]
                bias_i = bias_all[:, i * n_filters:(i + 1) * n_filters]
                acc = jnp.maximum(acc + bias_i, 0.0)       # (B, T, F)

                # Rows t >= l_out see more zero padding than Conv1d(padding=1)
                # allows; mask them to 0 (safe: ReLU output >= 0) before pool.
                l_out = lp_eff - ks + 1
                if l_out < t_out:
                    t_idx = jax.lax.broadcasted_iota(jnp.int32, (1, t_out, 1), 1)
                    acc = jnp.where(t_idx < l_out, acc, 0.0)

                pooled.append(jnp.max(acc, axis=1))        # (B, F)

            feat = jnp.concatenate(pooled, axis=-1).astype(jnp.bfloat16)  # (B, 3F)
            logits = jnp.dot(feat, wl_ref[...],
                             preferred_element_type=jnp.float32) + bl_ref[...]
            out_ref[...] = logits                          # (B, LANE_OUT) f32

    return kernel


def bias_detection_cnn(sequence_output, conv_params, linear_w, linear_b,
                       *, kernel_sizes=KERNEL_SIZES, n_filters=N_FILTERS,
                       n_classes=N_CLASSES, pad=PAD, chunk=CHUNK_N):
    """sequence_output: (B, L, D) float32. Returns logits (B, n_classes)."""
    batch, seq_len, d_model = sequence_output.shape
    n_conv = len(kernel_sizes)
    k_min, k_max = min(kernel_sizes), max(kernel_sizes)

    lp_eff = seq_len + 2 * pad                       # PyTorch padded length
    t_out = lp_eff - k_min + 1                       # rows computed per bank
    lp = _round_up(max(lp_eff, t_out + k_max - 1), 8)  # sublane-aligned length

    # Conv padding=1 fused with the bf16 cast on the wrapper side; the extra
    # zero rows (positions >= lp_eff) are masked in-kernel before the pool.
    xp = jnp.zeros((batch, lp, d_model), jnp.bfloat16)
    xp = xp.at[:, pad:pad + seq_len, :].set(sequence_output.astype(jnp.bfloat16))
    x_flat = xp.reshape(batch * lp, d_model)         # (M, D) bf16

    # Tap-major weight: column off_i + k*F + f  <-  w_i[k, :, f]
    w_cols, biases = [], []
    for (w, b), ks in zip(conv_params, kernel_sizes):
        w_cols.append(jnp.transpose(w, (1, 0, 2)).reshape(d_model, ks * n_filters))
        biases.append(b.reshape(1, n_filters))
    w_all = jnp.concatenate(w_cols, axis=1)          # (D, sum_k k*F)
    n_tap_cols = w_all.shape[1]
    total_cols = _round_up(n_tap_cols, chunk)
    n_chunks = total_cols // chunk
    w_all = jnp.pad(w_all, ((0, 0), (0, total_cols - n_tap_cols))
                    ).astype(jnp.bfloat16)           # (D, total_cols) bf16
    bias_all = jnp.concatenate(biases, axis=1)       # (1, n_conv*F) f32

    # Lane-dense head: pad (3F, n_classes) -> (3F, 128) with zero columns so
    # the logits store is an unmasked full-lane write; slice after the call.
    wl = jnp.zeros((n_conv * n_filters, LANE_OUT), jnp.float32)
    wl = wl.at[:, :n_classes].set(linear_w).astype(jnp.bfloat16)
    bl = jnp.zeros((1, LANE_OUT), jnp.float32).at[:, :n_classes].set(linear_b)

    kernel = _make_kernel(kernel_sizes, n_filters, batch, lp, lp_eff, t_out,
                          n_chunks, total_cols)

    m = batch * lp
    out = pl.pallas_call(
        kernel,
        out_shape=jax.ShapeDtypeStruct((batch, LANE_OUT), jnp.float32),
        grid_spec=pltpu.PrefetchScalarGridSpec(
            num_scalar_prefetch=0,
            grid=(n_chunks,),                        # stream weight N-chunks
            in_specs=[
                pl.BlockSpec((m, d_model), lambda j: (0, 0)),          # x (once)
                pl.BlockSpec((d_model, chunk), lambda j: (0, j)),      # W chunk
                pl.BlockSpec((1, n_conv * n_filters), lambda j: (0, 0)),
                pl.BlockSpec((n_conv * n_filters, LANE_OUT), lambda j: (0, 0)),
                pl.BlockSpec((1, LANE_OUT), lambda j: (0, 0)),
            ],
            out_specs=pl.BlockSpec((batch, LANE_OUT), lambda j: (0, 0)),
            scratch_shapes=[pltpu.VMEM((n_chunks, m, chunk), jnp.float32)],
        ),
        compiler_params=pltpu.CompilerParams(
            dimension_semantics=("arbitrary",)),     # carried scratch/output
    )(x_flat, w_all, bias_all, wl, bl)

    return out[:, :n_classes]


# --------------------------- pure-JAX reference ---------------------------- #
def reference(sequence_output, conv_params, linear_w, linear_b,
              kernel_sizes=KERNEL_SIZES):
    x_pad = jnp.pad(sequence_output, ((0, 0), (PAD, PAD), (0, 0)))
    feats = []
    for (w, bias), k_size in zip(conv_params, kernel_sizes):
        l_out = x_pad.shape[1] - k_size + 1
        out = sum(jnp.einsum("btd,df->btf", x_pad[:, k:k + l_out, :], w[k])
                  for k in range(k_size)) + bias
        out = jnp.maximum(out, 0.0)
        feats.append(jnp.max(out, axis=1))           # (B, F) max-pool over time
    feat = jnp.concatenate(feats, axis=-1)           # (B, 3F)
    return feat @ linear_w + linear_b                # dropout = identity (eval)


# --------------------------------- main ------------------------------------ #
if __name__ == "__main__":
    key = jax.random.PRNGKey(0)
    keys = jax.random.split(key, 2 * len(KERNEL_SIZES) + 3)

    # Deterministic synthetic parameters.
    # Conv1d weight in PyTorch is (F, D, K); we store the transposed layout
    # (K, D, F) so each tap is a lane-friendly (D, F) matmul operand.
    conv_params = []
    for i, k_size in enumerate(KERNEL_SIZES):
        w = 0.02 * jax.random.normal(keys[2 * i], (k_size, D_MODEL, N_FILTERS),
                                     dtype=jnp.float32)
        bias = 0.02 * jax.random.normal(keys[2 * i + 1], (1, N_FILTERS),
                                        dtype=jnp.float32)
        conv_params.append((w, bias))

    # Linear: PyTorch weight is (n_classes, 3F); we store its transpose (3F, n_classes).
    linear_w = 0.02 * jax.random.normal(
        keys[-3], (len(KERNEL_SIZES) * N_FILTERS, N_CLASSES), dtype=jnp.float32)
    linear_b = 0.02 * jax.random.normal(keys[-2], (1, N_CLASSES),
                                        dtype=jnp.float32)

    # Stand-in for BERT's sequence_output (see TODO above).
    sequence_output = jax.random.normal(keys[-1], (BATCH, SEQ_LEN, D_MODEL),
                                        dtype=jnp.float32)

    logits = bias_detection_cnn(sequence_output, conv_params, linear_w, linear_b)
    logits = jax.block_until_ready(logits)

    ref = reference(sequence_output, conv_params, linear_w, linear_b)
    assert logits.shape == (BATCH, N_CLASSES)
    # bf16 activations/weights in the kernel vs f32 reference -> loose tolerance.
    assert jnp.allclose(logits, ref, atol=2e-2, rtol=2e-2), (logits, ref)

    print("KERNEL_OK")
</pallas_src>

<mosaic_0001>
module attributes {stable_mosaic.version = 11 : i64} {
  func.func @kernel(%arg0: i32, %arg1: memref<48x768xbf16, #tpu.memory_space<vmem>>, %arg2: memref<768x256xbf16, #tpu.memory_space<vmem>>, %arg3: memref<1x192xf32, #tpu.memory_space<vmem>>, %arg4: memref<192x128xbf16, #tpu.memory_space<vmem>>, %arg5: memref<1x128xf32, #tpu.memory_space<vmem>>, %arg6: memref<2x128xf32, #tpu.memory_space<vmem>>, %arg7: memref<4x48x256xf32, #tpu.memory_space<vmem>>) attributes {dimension_semantics = [#tpu.dimension_semantics<arbitrary>], iteration_bounds = array<i64: 4>, scalar_prefetch = 0 : i64, scratch_operands = 1 : i64, tpu.core_type = #tpu.core_type<tc>, window_params = [{pipeline_mode = #tpu.pipeline_mode<synchronous>, transform_indices = @transform_0, window_bounds = array<i64: 48, 768>}, {transform_indices = @transform_1, window_bounds = array<i64: 768, 256>}, {pipeline_mode = #tpu.pipeline_mode<synchronous>, transform_indices = @transform_2, window_bounds = array<i64: 1, 192>}, {pipeline_mode = #tpu.pipeline_mode<synchronous>, transform_indices = @transform_3, window_bounds = array<i64: 192, 128>}, {pipeline_mode = #tpu.pipeline_mode<synchronous>, transform_indices = @transform_4, window_bounds = array<i64: 1, 128>}, {pipeline_mode = #tpu.pipeline_mode<synchronous>, transform_indices = @transform_5, window_bounds = array<i64: 2, 128>}]} {
    %c0 = arith.constant 0 : index
    %c0_0 = arith.constant 0 : index
    %0 = vector.load %arg1[%c0, %c0_0] : memref<48x768xbf16, #tpu.memory_space<vmem>>, vector<48x768xbf16>
    %c0_1 = arith.constant 0 : index
    %c0_2 = arith.constant 0 : index
    %1 = vector.load %arg2[%c0_1, %c0_2] : memref<768x256xbf16, #tpu.memory_space<vmem>>, vector<768x256xbf16>
    %cst = arith.constant dense<0.000000e+00> : vector<48x256xf32>
    %2 = tpu.matmul %0, %1, %cst {dimension_numbers = #tpu.dot_dimension_numbers<[1], [0], [0], [1], [0, 0, 1, 1], [], []>} : vector<48x768xbf16>, vector<768x256xbf16>, vector<48x256xf32> -> vector<48x256xf32>
    %3 = arith.index_cast %arg0 : i32 to index
    %c0_3 = arith.constant 0 : index
    %c0_4 = arith.constant 0 : index
    %4 = vector.load %arg7[%3, %c0_3, %c0_4] : memref<4x48x256xf32, #tpu.memory_space<vmem>>, vector<1x48x256xf32>
    %5 = vector.shape_cast %4 : vector<1x48x256xf32> to vector<48x256xf32>
    %6 = vector.shape_cast %2 : vector<48x256xf32> to vector<1x48x256xf32>
    tpu.vector_store %arg7[%3, %c0_3, %c0_4], %6 {strides = array<i32>} : memref<4x48x256xf32, #tpu.memory_space<vmem>>, vector<1x48x256xf32>,
    %c3_i32 = arith.constant 3 : i32
    %7 = arith.cmpi eq, %arg0, %c3_i32 : i32
    %8 = arith.extui %7 : i1 to i32
    %c0_i32 = arith.constant 0 : i32
    %9 = arith.cmpi ne, %8, %c0_i32 : i32
    scf.if %9 {
      %c0_5 = arith.constant 0 : index
      %c0_6 = arith.constant 0 : index
      %c0_7 = arith.constant 0 : index
      %10 = vector.load %arg7[%c0_5, %c0_6, %c0_7] : memref<4x48x256xf32, #tpu.memory_space<vmem>>, vector<1x48x256xf32>
      %11 = vector.shape_cast %10 : vector<1x48x256xf32> to vector<48x256xf32>
      %c1 = arith.constant 1 : index
      %c0_8 = arith.constant 0 : index
      %c0_9 = arith.constant 0 : index
      %12 = vector.load %arg7[%c1, %c0_8, %c0_9] : memref<4x48x256xf32, #tpu.memory_space<vmem>>, vector<1x48x256xf32>
      %13 = vector.shape_cast %12 : vector<1x48x256xf32> to vector<48x256xf32>
      %c2 = arith.constant 2 : index
      %c0_10 = arith.constant 0 : index
      %c0_11 = arith.constant 0 : index
      %14 = vector.load %arg7[%c2, %c0_10, %c0_11] : memref<4x48x256xf32, #tpu.memory_space<vmem>>, vector<1x48x256xf32>
      %15 = vector.shape_cast %14 : vector<1x48x256xf32> to vector<48x256xf32>
      %c3 = arith.constant 3 : index
      %c0_12 = arith.constant 0 : index
      %c0_13 = arith.constant 0 : index
      %16 = vector.load %arg7[%c3, %c0_12, %c0_13] : memref<4x48x256xf32, #tpu.memory_space<vmem>>, vector<1x48x256xf32>
      %17 = vector.shape_cast %16 : vector<1x48x256xf32> to vector<48x256xf32>
      %18 = tpu.concatenate %11, %13, %15, %17 in 1 : vector<48x256xf32>, vector<48x256xf32>, vector<48x256xf32>, vector<48x256xf32> -> vector<48x1024xf32>
      %19 = vector.shape_cast %18 : vector<48x1024xf32> to vector<2x24x1024xf32>
      %c0_14 = arith.constant 0 : index
      %c0_15 = arith.constant 0 : index
      %20 = vector.load %arg3[%c0_14, %c0_15] : memref<1x192xf32, #tpu.memory_space<vmem>>, vector<1x192xf32>
      %21 = vector.extract_strided_slice %19 {offsets = [0, 0, 0], sizes = [2, 16, 64], strides = [1, 1, 1]} : vector<2x24x1024xf32> to vector<2x16x64xf32>
      %22 = vector.extract_strided_slice %19 {offsets = [0, 1, 64], sizes = [2, 16, 64], strides = [1, 1, 1]} : vector<2x24x1024xf32> to vector<2x16x64xf32>
      %23 = arith.addf %21, %22 : vector<2x16x64xf32>
      %24 = vector.extract_strided_slice %19 {offsets = [0, 2, 128], sizes = [2, 16, 64], strides = [1, 1, 1]} : vector<2x24x1024xf32> to vector<2x16x64xf32>
      %25 = arith.addf %23, %24 : vector<2x16x64xf32>
      %26 = vector.extract_strided_slice %20 {offsets = [0, 0], sizes = [1, 64], strides = [1, 1]} : vector<1x192xf32> to vector<1x64xf32>
      %27 = vector.shape_cast %26 : vector<1x64xf32> to vector<1x1x64xf32>
      %28 = vector.broadcast %27 : vector<1x1x64xf32> to vector<2x16x64xf32>
      %29 = arith.addf %25, %28 : vector<2x16x64xf32>
      %cst_16 = arith.constant 0.000000e+00 : f32
      %30 = vector.broadcast %cst_16 : f32 to vector<2x16x64xf32>
      %31 = arith.maximumf %29, %30 : vector<2x16x64xf32>
      %cst_17 = arith.constant dense<0xFF800000> : vector<2x64xf32>
      %32 = vector.multi_reduction <maximumf>, %31, %cst_17 [1] : vector<2x16x64xf32> to vector<2x64xf32>
      %33 = vector.extract_strided_slice %19 {offsets = [0, 0, 192], sizes = [2, 16, 64], strides = [1, 1, 1]} : vector<2x24x1024xf32> to vector<2x16x64xf32>
      %34 = vector.extract_strided_slice %19 {offsets = [0, 1, 256], sizes = [2, 16, 64], strides = [1, 1, 1]} : vector<2x24x1024xf32> to vector<2x16x64xf32>
      %35 = arith.addf %33, %34 : vector<2x16x64xf32>
      %36 = vector.extract_strided_slice %19 {offsets = [0, 2, 320], sizes = [2, 16, 64], strides = [1, 1, 1]} : vector<2x24x1024xf32> to vector<2x16x64xf32>
      %37 = arith.addf %35, %36 : vector<2x16x64xf32>
      %38 = vector.extract_strided_slice %19 {offsets = [0, 3, 384], sizes = [2, 16, 64], strides = [1, 1, 1]} : vector<2x24x1024xf32> to vector<2x16x64xf32>
      %39 = arith.addf %37, %38 : vector<2x16x64xf32>
      %40 = vector.extract_strided_slice %19 {offsets = [0, 4, 448], sizes = [2, 16, 64], strides = [1, 1, 1]} : vector<2x24x1024xf32> to vector<2x16x64xf32>
      %41 = arith.addf %39, %40 : vector<2x16x64xf32>
      %42 = vector.extract_strided_slice %20 {offsets = [0, 64], sizes = [1, 64], strides = [1, 1]} : vector<1x192xf32> to vector<1x64xf32>
      %43 = vector.shape_cast %42 : vector<1x64xf32> to vector<1x1x64xf32>
      %44 = vector.broadcast %43 : vector<1x1x64xf32> to vector<2x16x64xf32>
      %45 = arith.addf %41, %44 : vector<2x16x64xf32>
      %cst_18 = arith.constant 0.000000e+00 : f32
      %46 = vector.broadcast %cst_18 : f32 to vector<2x16x64xf32>
      %47 = arith.maximumf %45, %46 : vector<2x16x64xf32>
      %48 = tpu.iota {dimensions = array<i32: 1>} : vector<1x16x1xi32>
      %c14_i32 = arith.constant 14 : i32
      %49 = vector.broadcast %c14_i32 : i32 to vector<1x16x1xi32>
      %50 = arith.cmpi slt, %48, %49 : vector<1x16x1xi32>
      %cst_19 = arith.constant 0.000000e+00 : f32
      %51 = vector.shape_cast %50 : vector<1x16x1xi1> to vector<1x16x1xi1>
      %52 = vector.broadcast %51 : vector<1x16x1xi1> to vector<2x16x64xi1>
      %53 = vector.broadcast %cst_19 : f32 to vector<2x16x64xf32>
      %54 = arith.select %52, %47, %53 : vector<2x16x64xi1>, vector<2x16x64xf32>
      %cst_20 = arith.constant dense<0xFF800000> : vector<2x64xf32>
      %55 = vector.multi_reduction <maximumf>, %54, %cst_20 [1] : vector<2x16x64xf32> to vector<2x64xf32>
      %56 = vector.extract_strided_slice %19 {offsets = [0, 0, 512], sizes = [2, 16, 64], strides = [1, 1, 1]} : vector<2x24x1024xf32> to vector<2x16x64xf32>
      %57 = vector.extract_strided_slice %19 {offsets = [0, 1, 576], sizes = [2, 16, 64], strides = [1, 1, 1]} : vector<2x24x1024xf32> to vector<2x16x64xf32>
      %58 = arith.addf %56, %57 : vector<2x16x64xf32>
      %59 = vector.extract_strided_slice %19 {offsets = [0, 2, 640], sizes = [2, 16, 64], strides = [1, 1, 1]} : vector<2x24x1024xf32> to vector<2x16x64xf32>
      %60 = arith.addf %58, %59 : vector<2x16x64xf32>
      %61 = vector.extract_strided_slice %19 {offsets = [0, 3, 704], sizes = [2, 16, 64], strides = [1, 1, 1]} : vector<2x24x1024xf32> to vector<2x16x64xf32>
      %62 = arith.addf %60, %61 : vector<2x16x64xf32>
      %63 = vector.extract_strided_slice %19 {offsets = [0, 4, 768], sizes = [2, 16, 64], strides = [1, 1, 1]} : vector<2x24x1024xf32> to vector<2x16x64xf32>
      %64 = arith.addf %62, %63 : vector<2x16x64xf32>
      %65 = vector.extract_strided_slice %19 {offsets = [0, 5, 832], sizes = [2, 16, 64], strides = [1, 1, 1]} : vector<2x24x1024xf32> to vector<2x16x64xf32>
      %66 = arith.addf %64, %65 : vector<2x16x64xf32>
      %67 = vector.extract_strided_slice %19 {offsets = [0, 6, 896], sizes = [2, 16, 64], strides = [1, 1, 1]} : vector<2x24x1024xf32> to vector<2x16x64xf32>
      %68 = arith.addf %66, %67 : vector<2x16x64xf32>
      %69 = vector.extract_strided_slice %20 {offsets = [0, 128], sizes = [1, 64], strides = [1, 1]} : vector<1x192xf32> to vector<1x64xf32>
      %70 = vector.shape_cast %69 : vector<1x64xf32> to vector<1x1x64xf32>
      %71 = vector.broadcast %70 : vector<1x1x64xf32> to vector<2x16x64xf32>
      %72 = arith.addf %68, %71 : vector<2x16x64xf32>
      %cst_21 = arith.constant 0.000000e+00 : f32
      %73 = vector.broadcast %cst_21 : f32 to vector<2x16x64xf32>
      %74 = arith.maximumf %72, %73 : vector<2x16x64xf32>
      %75 = tpu.iota {dimensions = array<i32: 1>} : vector<1x16x1xi32>
      %c12_i32 = arith.constant 12 : i32
      %76 = vector.broadcast %c12_i32 : i32 to vector<1x16x1xi32>
      %77 = arith.cmpi slt, %75, %76 : vector<1x16x1xi32>
      %cst_22 = arith.constant 0.000000e+00 : f32
      %78 = vector.shape_cast %77 : vector<1x16x1xi1> to vector<1x16x1xi1>
      %79 = vector.broadcast %78 : vector<1x16x1xi1> to vector<2x16x64xi1>
      %80 = vector.broadcast %cst_22 : f32 to vector<2x16x64xf32>
      %81 = arith.select %79, %74, %80 : vector<2x16x64xi1>, vector<2x16x64xf32>
      %cst_23 = arith.constant dense<0xFF800000> : vector<2x64xf32>
      %82 = vector.multi_reduction <maximumf>, %81, %cst_23 [1] : vector<2x16x64xf32> to vector<2x64xf32>
      %83 = tpu.concatenate %32, %55, %82 in 1 : vector<2x64xf32>, vector<2x64xf32>, vector<2x64xf32> -> vector<2x192xf32>
      %84 = arith.truncf %83 : vector<2x192xf32> to vector<2x192xbf16>
      %c0_24 = arith.constant 0 : index
      %c0_25 = arith.constant 0 : index
      %85 = vector.load %arg4[%c0_24, %c0_25] : memref<192x128xbf16, #tpu.memory_space<vmem>>, vector<192x128xbf16>
      %cst_26 = arith.constant dense<0.000000e+00> : vector<2x128xf32>
      %86 = tpu.matmul %84, %85, %cst_26 {dimension_numbers = #tpu.dot_dimension_numbers<[1], [0], [0], [1], [0, 0, 1, 1], [], []>} : vector<2x192xbf16>, vector<192x128xbf16>, vector<2x128xf32> -> vector<2x128xf32>
      %c0_27 = arith.constant 0 : index
      %c0_28 = arith.constant 0 : index
      %87 = vector.load %arg5[%c0_27, %c0_28] : memref<1x128xf32, #tpu.memory_space<vmem>>, vector<1x128xf32>
      %88 = vector.broadcast %87 : vector<1x128xf32> to vector<2x128xf32>
      %89 = arith.addf %86, %88 : vector<2x128xf32>
      %c0_29 = arith.constant 0 : index
      %c0_30 = arith.constant 0 : index
      %90 = vector.load %arg6[%c0_29, %c0_30] : memref<2x128xf32, #tpu.memory_space<vmem>>, vector<2x128xf32>
      tpu.vector_store %arg6[%c0_29, %c0_30], %89 {strides = array<i32>} : memref<2x128xf32, #tpu.memory_space<vmem>>, vector<2x128xf32>,
    } else {
    }
    return
  }
  func.func @transform_0(%arg0: i32) -> (i32, i32) {
    %c0_i32 = arith.constant 0 : i32
    %c0_i32_0 = arith.constant 0 : i32
    %c0_i32_1 = arith.constant 0 : i32
    return %c0_i32, %c0_i32_0 : i32, i32
  }
  func.func @transform_1(%arg0: i32) -> (i32, i32) {
    %c0_i32 = arith.constant 0 : i32
    %c0_i32_0 = arith.constant 0 : i32
    return %c0_i32, %arg0 : i32, i32
  }
  func.func @transform_2(%arg0: i32) -> (i32, i32) {
    %c0_i32 = arith.constant 0 : i32
    %c0_i32_0 = arith.constant 0 : i32
    %c0_i32_1 = arith.constant 0 : i32
    return %c0_i32, %c0_i32_0 : i32, i32
  }
  func.func @transform_3(%arg0: i32) -> (i32, i32) {
    %c0_i32 = arith.constant 0 : i32
    %c0_i32_0 = arith.constant 0 : i32
    %c0_i32_1 = arith.constant 0 : i32
    return %c0_i32, %c0_i32_0 : i32, i32
  }
  func.func @transform_4(%arg0: i32) -> (i32, i32) {
    %c0_i32 = arith.constant 0 : i32
    %c0_i32_0 = arith.constant 0 : i32
    %c0_i32_1 = arith.constant 0 : i32
    return %c0_i32, %c0_i32_0 : i32, i32
  }
  func.func @transform_5(%arg0: i32) -> (i32, i32) {
    %c0_i32 = arith.constant 0 : i32
    %c0_i32_0 = arith.constant 0 : i32
    %c0_i32_1 = arith.constant 0 : i32
    return %c0_i32, %c0_i32_0 : i32, i32
  }
}

</mosaic_0001>

<llo_original>
// kernel: tpu_custom_call.1
$region0: #{tpu_custom_call.1}
  #allocation0 [shape = 'u32[]', space=smem, size = 0x4, offset = 0x4, fixed_abs, tag = 'smem constant byte address 0x4 - core index']
  #allocation1 [shape = 'u32[144,128]{1,0:T(1,128)}', space=vmem, size = 0x12000, scoped, tag = 'internal scratch']
  #allocation2 [shape = 'f32[4,48,256]{2,1,0:T(8,128)}', space=vmem, size = 0x30000, scoped, tag = 'scratch operand']
  %s0 = inlined_call_operand.hbm [shape: bf16[48,768], index: 0, kind: input, shape index: {}]
  %s1 = inlined_call_operand.hbm [shape: bf16[768,1024], index: 1, kind: input, shape index: {}]
  %s2 = inlined_call_operand.hbm [shape: f32[1,192], index: 2, kind: input, shape index: {}]
  %s3 = inlined_call_operand.hbm [shape: bf16[192,128], index: 3, kind: input, shape index: {}]
  %s4 = inlined_call_operand.hbm [shape: f32[1,128], index: 4, kind: input, shape index: {}]
  %s5 = inlined_call_operand.hbm [shape: f32[2,128], index: 5, kind: output, shape index: {}]
  %s6 = sld [smem:[#allocation0]]
  $region77: #{tpu_custom_call.1} parent=0
    _
  %s8 = ssub.s32 1, %s6
  %s9 = scalar_select 0, %s8, %s6
  $region1: #{tpu_custom_call.1} parent=0
    #allocation3 [shape = 'u8[73728]{0}', space=vmem, size = 0x12000, scoped, tag = 'input window, operand 0, single buffered']
    #allocation4 [shape = 's32[2]{0}', space=sflag, size = 0x8, scoped, tag = 'scoped memory for tpu_custom_call.1']
    #allocation5 [shape = 's32[2]{0}', space=sflag, size = 0x8, scoped, tag = 'scoped memory for tpu_custom_call.1']
    #allocation6 [shape = 'u8[786432]{0}', space=vmem, size = 0xc0000, scoped, tag = 'input window, operand 1']
    #allocation7 [shape = 's32[2]{0}', space=sflag, size = 0x8, scoped, tag = 'scoped memory for tpu_custom_call.1']
    #allocation8 [shape = 'u8[1024]{0}', space=vmem, size = 0x400, scoped, tag = 'input window, operand 2, single buffered']
    #allocation9 [shape = 'u8[49152]{0}', space=vmem, size = 0xc000, scoped, tag = 'input window, operand 3, single buffered']
    #allocation10 [shape = 's32[1]{0}', space=sflag, size = 0x4, scoped, tag = 'scoped memory for tpu_custom_call.1']
    #allocation11 [shape = 'u8[512]{0}', space=vmem, size = 0x400, scoped, tag = 'input window, operand 4, single buffered']
    #allocation12 [shape = 'u8[1024]{0}', space=vmem, size = 0x400, scoped, tag = 'output window, operand 0, single buffered']
    %10 = vsyncpa [#allocation4], 0
    %11 = vsyncpa [#allocation7], 0
    %s12 = scalar_lea.sflag [#allocation7], 1
    %13 = vsyncpa %s12, 0
    %14 = vsyncpa [#allocation10], 0
    %15 = vsyncpa [#allocation5], 0
    loop: start=0, step=1, limit=6
    $region2: #{tpu_custom_call.1} parent=1 // loop_pre_header
      _
    $region3: #{tpu_custom_call.1} parent=1 // loop_header
      %s17 = sphi 0, %s21
      %p18 = scmp.ge.s32.totalorder %s17, 6
      %s25 = sphi 0, %s25
      %s27 = sphi 0, %s25
      %s28 = sphi 0, %s27
      %s42 = sphi 0, %s28
      %s48 = sphi 0, %s50
      %s51 = sphi 0, %s48
      %s52 = sphi 0, %s51
      %s68 = sphi 0, %s52
      %s72 = sphi 0, %s72
      %s74 = sphi 0, %s72
      %s75 = sphi 0, %s74
      %s89 = sphi 0, %s75
      %s93 = sphi 0, %s93
      %s95 = sphi 0, %s93
      %s96 = sphi 0, %s95
      %s110 = sphi 0, %s96
      %s114 = sphi 0, %s114
      %s116 = sphi 0, %s114
      %s117 = sphi 0, %s116
      %s131 = sphi 0, %s117
      %s135 = sphi 0, %s135
      %s137 = sphi 0, %s135
      %s138 = sphi 0, %s137
      %s152 = sphi 0, %s138
    $region4: #{tpu_custom_call.1} parent=1 // loop_header_branch
      %20 = sbr.rel (%p18) target = $region8
    $region5: #{tpu_custom_call.1} parent=1 // loop_body
      %s22 = ssub.s32 %s17, 1
      %s23 = ssub.s32 %s17, 2
      %s24 = sadd.s32 %s17, 1
      %s26 = sadd.s32 %s25, 1
      %p29 = scmp.eq.s32.totalorder %s17, 3
      %p30 = scmp.ne.s32.totalorder %s25, %s27
      %p31 = scmp.eq.s32.totalorder %s17, 0
      %p32 = por %p30, %p31
      %p33 = scmp.ne.s32.totalorder %s25, %s27
      %p34 = scmp.eq.s32.totalorder %s22, 3
      %p35 = por %p33, %p34
      %p36 = scmp.ne.s32.totalorder %s27, %s28
      %p37 = scmp.eq.s32.totalorder %s22, 0
      %p38 = por %p36, %p37
      %p39 = scmp.ne.s32.totalorder %s27, %s28
      %p40 = scmp.eq.s32.totalorder %s23, 3
      %p41 = por %p39, %p40
      %p43 = scmp.ne.s32.totalorder %s28, %s42
      %p44 = scmp.eq.s32.totalorder %s23, 0
      %p45 = por %p43, %p44
      %s46 = ssub.s32 %s17, %s24
      %p47 = scmp.eq.s32.totalorder %s46, 0
      %s49 = sadd.s32 %s48, 1
      %s50 = scalar_select %p47, %s48, %s49
      %p53 = pneg %p47
      %p54 = scmp.eq.s32.totalorder %s17, 3
      %p55 = por %p53, %p54
      %p56 = scmp.ne.s32.totalorder %s48, %s51
      %p57 = scmp.eq.s32.totalorder %s17, 0
      %p58 = por %p56, %p57
      %p59 = scmp.ne.s32.totalorder %s48, %s51
      %p60 = scmp.eq.s32.totalorder %s22, 3
      %p61 = por %p59, %p60
      %p62 = scmp.ne.s32.totalorder %s51, %s52
      %p63 = scmp.eq.s32.totalorder %s22, 0
      %p64 = por %p62, %p63
      %p65 = scmp.ne.s32.totalorder %s51, %s52
      %p66 = scmp.eq.s32.totalorder %s23, 3
      %p67 = por %p65, %p66
      %p69 = scmp.ne.s32.totalorder %s52, %s68
      %p70 = scmp.eq.s32.totalorder %s23, 0
      %p71 = por %p69, %p70
      %s73 = sadd.s32 %s72, 1
      %p76 = scmp.eq.s32.totalorder %s17, 3
      %p77 = scmp.ne.s32.totalorder %s72, %s74
      %p78 = scmp.eq.s32.totalorder %s17, 0
      %p79 = por %p77, %p78
      %p80 = scmp.ne.s32.totalorder %s72, %s74
      %p81 = scmp.eq.s32.totalorder %s22, 3
      %p82 = por %p80, %p81
      %p83 = scmp.ne.s32.totalorder %s74, %s75
      %p84 = scmp.eq.s32.totalorder %s22, 0
      %p85 = por %p83, %p84
      %p86 = scmp.ne.s32.totalorder %s74, %s75
      %p87 = scmp.eq.s32.totalorder %s23, 3
      %p88 = por %p86, %p87
      %p90 = scmp.ne.s32.totalorder %s75, %s89
      %p91 = scmp.eq.s32.totalorder %s23, 0
      %p92 = por %p90, %p91
      %s94 = sadd.s32 %s93, 1
      %p97 = scmp.eq.s32.totalorder %s17, 3
      %p98 = scmp.ne.s32.totalorder %s93, %s95
      %p99 = scmp.eq.s32.totalorder %s17, 0
      %p100 = por %p98, %p99
      %p101 = scmp.ne.s32.totalorder %s93, %s95
      %p102 = scmp.eq.s32.totalorder %s22, 3
      %p103 = por %p101, %p102
      %p104 = scmp.ne.s32.totalorder %s95, %s96
      %p105 = scmp.eq.s32.totalorder %s22, 0
      %p106 = por %p104, %p105
      %p107 = scmp.ne.s32.totalorder %s95, %s96
      %p108 = scmp.eq.s32.totalorder %s23, 3
      %p109 = por %p107, %p108
      %p111 = scmp.ne.s32.totalorder %s96, %s110
      %p112 = scmp.eq.s32.totalorder %s23, 0
      %p113 = por %p111, %p112
      %s115 = sadd.s32 %s114, 1
      %p118 = scmp.eq.s32.totalorder %s17, 3
      %p119 = scmp.ne.s32.totalorder %s114, %s116
      %p120 = scmp.eq.s32.totalorder %s17, 0
      %p121 = por %p119, %p120
      %p122 = scmp.ne.s32.totalorder %s114, %s116
      %p123 = scmp.eq.s32.totalorder %s22, 3
      %p124 = por %p122, %p123
      %p125 = scmp.ne.s32.totalorder %s116, %s117
      %p126 = scmp.eq.s32.totalorder %s22, 0
      %p127 = por %p125, %p126
      %p128 = scmp.ne.s32.totalorder %s116, %s117
      %p129 = scmp.eq.s32.totalorder %s23, 3
      %p130 = por %p128, %p129
      %p132 = scmp.ne.s32.totalorder %s117, %s131
      %p133 = scmp.eq.s32.totalorder %s23, 0
      %p134 = por %p132, %p133
      %s136 = sadd.s32 %s135, 1
      %p139 = scmp.eq.s32.totalorder %s17, 3
      %p140 = scmp.ne.s32.totalorder %s135, %s137
      %p141 = scmp.eq.s32.totalorder %s17, 0
      %p142 = por %p140, %p141
      %p143 = scmp.ne.s32.totalorder %s135, %s137
      %p144 = scmp.eq.s32.totalorder %s22, 3
      %p145 = por %p143, %p144
      %p146 = scmp.ne.s32.totalorder %s137, %s138
      %p147 = scmp.eq.s32.totalorder %s22, 0
      %p148 = por %p146, %p147
      %p149 = scmp.ne.s32.totalorder %s137, %s138
      %p150 = scmp.eq.s32.totalorder %s23, 3
      %p151 = por %p149, %p150
      %p153 = scmp.ne.s32.totalorder %s138, %s152
      %p154 = scmp.eq.s32.totalorder %s23, 0
      %p155 = por %p153, %p154
      %p156 = scmp.le.s32.totalorder 1, %s17
      %p157 = scmp.lt.s32.totalorder %s17, 5
      %p158 = pnand %p156, %p157
      %p159 = pneg %p158
      // Predicated region
      $region9: #{tpu_custom_call.1} parent=5 // pred_check
        _
      $region10: #{tpu_custom_call.1} parent=5 // pred_check_branch
        %161 = sbr.rel (%p158) target = $region12
      $region11: #{tpu_custom_call.1} parent=5 // pred_region
        %s162 = ssub.s32 %s17, 1
        // Predicated region
        $region13: #{tpu_custom_call.1} parent=11 // pred_check
          %p163 = pneg %p38
        $region14: #{tpu_custom_call.1} parent=11 // pred_check_branch
          %165 = sbr.rel (%p163) target = $region16
        $region15: #{tpu_custom_call.1} parent=11 // pred_region
          %s167 = ssub.s32 2304, 2304
          %168 = vsyncadd [#allocation4], %s167
          %s169 = sshll.u32 [#allocation3], 4
          %s170 = int_to_ptr.vmem [resolvable:$true] %s169
          %175 = dma.hbm_to_vmem [thread:$0]  %s0, 2304, %s170, [#allocation4], 384, 384, 24
        $region16: #{tpu_custom_call.1} parent=11 // pred_fallthru
          _
        // Predicated region
        $region17: #{tpu_custom_call.1} parent=11 // pred_check
          %p176 = pneg %p85
        $region18: #{tpu_custom_call.1} parent=11 // pred_check_branch
          %178 = sbr.rel (%p176) target = $region20
        $region19: #{tpu_custom_call.1} parent=11 // pred_region
          %s180 = ssub.s32 32, 32
          %181 = vsyncadd [#allocation7], %s180
          %s183 = sshll.u32 [#allocation8], 4
          %s184 = int_to_ptr.vmem [resolvable:$true] %s183
          %186 = dma.hbm_to_vmem [thread:$0]  %s2, 32, %s184, [#allocation7]
        $region20: #{tpu_custom_call.1} parent=11 // pred_fallthru
          _
        // Predicated region
        $region21: #{tpu_custom_call.1} parent=11 // pred_check
          %p187 = pneg %p106
        $region22: #{tpu_custom_call.1} parent=11 // pred_check_branch
          %189 = sbr.rel (%p187) target = $region24
        $region23: #{tpu_custom_call.1} parent=11 // pred_region
          %s191 = ssub.s32 1536, 1536
          %192 = vsyncadd [#allocation10], %s191
          %s193 = sshll.u32 [#allocation9], 4
          %s194 = int_to_ptr.vmem [resolvable:$true] %s193
          %199 = dma.hbm_to_vmem [thread:$0]  %s3, 1536, %s194, [#allocation10], 64, 64, 4
        $region24: #{tpu_custom_call.1} parent=11 // pred_fallthru
          _
        // Predicated region
        $region25: #{tpu_custom_call.1} parent=11 // pred_check
          %p200 = pneg %p127
        $region26: #{tpu_custom_call.1} parent=11 // pred_check_branch
          %202 = sbr.rel (%p200) target = $region28
        $region27: #{tpu_custom_call.1} parent=11 // pred_region
          %s204 = ssub.s32 16, 16
          %205 = vsyncadd [#allocation10], %s204
          %s207 = sshll.u32 [#allocation11], 4
          %s208 = int_to_ptr.vmem [resolvable:$true] %s207
          %210 = dma.hbm_to_vmem [thread:$0]  %s4, 16, %s208, [#allocation10]
        $region28: #{tpu_custom_call.1} parent=11 // pred_fallthru
          _
      $region12: #{tpu_custom_call.1} parent=5 // pred_fallthru
        _
      %p211 = scmp.lt.s32.totalorder %s17, 4
      // Predicated region
      $region29: #{tpu_custom_call.1} parent=5 // pred_check
        %p212 = pneg %p211
      $region30: #{tpu_custom_call.1} parent=5 // pred_check_branch
        %214 = sbr.rel (%p212) target = $region32
      $region31: #{tpu_custom_call.1} parent=5 // pred_region
        // Predicated region
        $region33: #{tpu_custom_call.1} parent=31 // pred_check
          %p215 = pneg %p58
        $region34: #{tpu_custom_call.1} parent=31 // pred_check_branch
          %217 = sbr.rel (%p215) target = $region36
        $region35: #{tpu_custom_call.1} parent=31 // pred_region
          %s218 = sand.u32 %s17, 1
          %s219 = scalar_lea.sflag [#allocation7], %s218
          %s220 = sand.u32 %s48, 1
          %s221 = smul.addr %s220, 768
          %s222 = scalar_lea.vmem [#allocation6], %s221
          %s223 = smul.u32 2, %s17
          %s225 = ssub.s32 12288, 12288
          %226 = vsyncadd %s219, %s225
          %s227 = smul.addr %s223, 64
          %s228 = scalar_lea.hbm %s1, %s227
          %s229 = sshll.u32 %s222, 4
          %s230 = int_to_ptr.vmem [resolvable:$true] %s229
          %235 = dma.hbm_to_vmem [thread:$0]  %s228, 12288, %s230, %s219, 512, 128, 8
        $region36: #{tpu_custom_call.1} parent=31 // pred_fallthru
          _
      $region32: #{tpu_custom_call.1} parent=5 // pred_fallthru
        _
      %p236 = scmp.le.s32.totalorder 1, %s17
      %p237 = scmp.lt.s32.totalorder %s17, 5
      %p238 = pnand %p236, %p237
      %p239 = pneg %p238
      // Predicated region
      $region37: #{tpu_custom_call.1} parent=5 // pred_check
        _
      $region38: #{tpu_custom_call.1} parent=5 // pred_check_branch
        %241 = sbr.rel (%p238) target = $region40
      $region39: #{tpu_custom_call.1} parent=5 // pred_region
        %s242 = ssub.s32 %s17, 1
        // Predicated region
        $region41: #{tpu_custom_call.1} parent=39 // pred_check
          %p243 = pneg %p38
        $region42: #{tpu_custom_call.1} parent=39 // pred_check_branch
          %245 = sbr.rel (%p243) target = $region44
        $region43: #{tpu_custom_call.1} parent=39 // pred_region
          %246 = dma.done [#allocation4], 2304
        $region44: #{tpu_custom_call.1} parent=39 // pred_fallthru
          _
        %s247 = sand.u32 %s22, 1
        %s248 = scalar_lea.sflag [#allocation7], %s247
        %s249 = sand.u32 %s51, 1
        %s250 = smul.addr %s249, 768
        %s251 = scalar_lea.vmem [#allocation6], %s250
        // Predicated region
        $region45: #{tpu_custom_call.1} parent=39 // pred_check
          %p252 = pneg %p64
        $region46: #{tpu_custom_call.1} parent=39 // pred_check_branch
          %254 = sbr.rel (%p252) target = $region48
        $region47: #{tpu_custom_call.1} parent=39 // pred_region
          %255 = dma.done %s248, 12288
        $region48: #{tpu_custom_call.1} parent=39 // pred_fallthru
          _
        // Predicated region
        $region49: #{tpu_custom_call.1} parent=39 // pred_check
          %p256 = pneg %p85
        $region50: #{tpu_custom_call.1} parent=39 // pred_check_branch
          %258 = sbr.rel (%p256) target = $region52
        $region51: #{tpu_custom_call.1} parent=39 // pred_region
          %259 = dma.done [#allocation7], 32
        $region52: #{tpu_custom_call.1} parent=39 // pred_fallthru
          _
        // Predicated region
        $region53: #{tpu_custom_call.1} parent=39 // pred_check
          %p260 = pneg %p106
        $region54: #{tpu_custom_call.1} parent=39 // pred_check_branch
          %262 = sbr.rel (%p260) target = $region56
        $region55: #{tpu_custom_call.1} parent=39 // pred_region
          %263 = dma.done [#allocation10], 1536
        $region56: #{tpu_custom_call.1} parent=39 // pred_fallthru
          _
        // Predicated region
        $region57: #{tpu_custom_call.1} parent=39 // pred_check
          %p264 = pneg %p127
        $region58: #{tpu_custom_call.1} parent=39 // pred_check_branch
          %266 = sbr.rel (%p264) target = $region60
        $region59: #{tpu_custom_call.1} parent=39 // pred_region
          %267 = dma.done [#allocation10], 16
        $region60: #{tpu_custom_call.1} parent=39 // pred_fallthru
          _
        %p268 = pneg %p38
        %p269 = pneg %p35
        %s270 = sand.u32 %s22, 1
        %s271 = scalar_lea.sflag [#allocation7], %s270
        %s272 = sand.u32 %s51, 1
        %s273 = smul.addr %s272, 768
        %s274 = scalar_lea.vmem [#allocation6], %s273
        %p275 = pneg %p64
        %p276 = pneg %p61
        %p277 = pneg %p85
        %p278 = pneg %p82
        %p279 = pneg %p106
        %p280 = pneg %p103
        %p281 = pneg %p127
        %p282 = pneg %p124
        %p283 = pneg %p148
        %p284 = pneg %p145
        %s285 = smul.u32 2, %s22
        %v287 = vld [vmem:[#allocation3] sm:$0xff]
        %v288 = vld [vmem:[#allocation3 + $0x8] sm:$0xff]
        %v289 = vld [vmem:[#allocation3 + $0x10] sm:$0xff]
        %v290 = vld [vmem:[#allocation3 + $0x18] sm:$0xff]
        %v291 = vld [vmem:[#allocation3 + $0x20] sm:$0xff]
        %v292 = vld [vmem:[#allocation3 + $0x28] sm:$0xff]
        %v293 = vld [vmem:[#allocation3 + $0x30] sm:$0xff]
        %v294 = vld [vmem:[#allocation3 + $0x38] sm:$0xff]
        %v295 = vld [vmem:[#allocation3 + $0x40] sm:$0xff]
        %v296 = vld [vmem:[#allocation3 + $0x48] sm:$0xff]
        %v297 = vld [vmem:[#allocation3 + $0x50] sm:$0xff]
        %v298 = vld [vmem:[#allocation3 + $0x58] sm:$0xff]
        %v299 = vld [vmem:[#allocation3 + $0x60] sm:$0xff]
        %v300 = vld [vmem:[#allocation3 + $0x68] sm:$0xff]
        %v301 = vld [vmem:[#allocation3 + $0x70] sm:$0xff]
        %v302 = vld [vmem:[#allocation3 + $0x78] sm:$0xff]
        %v303 = vld [vmem:[#allocation3 + $0x80] sm:$0xff]
        %v304 = vld [vmem:[#allocation3 + $0x88] sm:$0xff]
        %v305 = vld [vmem:[%s251] sm:$0xff]
        %v306 = vld [vmem:[%s251 + $0x8] sm:$0xff]
        %v307 = vld [vmem:[%s251 + $0x10] sm:$0xff]
        %v308 = vld [vmem:[%s251 + $0x18] sm:$0xff]
        %v309 = vld [vmem:[%s251 + $0x20] sm:$0xff]
        %v310 = vld [vmem:[%s251 + $0x28] sm:$0xff]
        %v311 = vld [vmem:[%s251 + $0x30] sm:$0xff]
        %v312 = vld [vmem:[%s251 + $0x38] sm:$0xff]
        %v313 = vld [vmem:[%s251 + $0x40] sm:$0xff]
        %v314 = vld [vmem:[%s251 + $0x48] sm:$0xff]
        %v315 = vld [vmem:[%s251 + $0x50] sm:$0xff]
        %v316 = vld [vmem:[%s251 + $0x58] sm:$0xff]
        %v317 = vld [vmem:[%s251 + $0x60] sm:$0xff]
        %v318 = vld [vmem:[%s251 + $0x68] sm:$0xff]
        %v319 = vld [vmem:[%s251 + $0x70] sm:$0xff]
        %v320 = vld [vmem:[%s251 + $0x78] sm:$0xff]
        %v321 = vld [vmem:[%s251 + $0x80] sm:$0xff]
        %v322 = vld [vmem:[%s251 + $0x88] sm:$0xff]
        %v323 = vld [vmem:[%s251 + $0x90] sm:$0xff]
        %v324 = vld [vmem:[%s251 + $0x98] sm:$0xff]
        %v325 = vld [vmem:[%s251 + $0xa0] sm:$0xff]
        %v326 = vld [vmem:[%s251 + $0xa8] sm:$0xff]
        %v327 = vld [vmem:[%s251 + $0xb0] sm:$0xff]
        %v328 = vld [vmem:[%s251 + $0xb8] sm:$0xff]
        %v329 = vld [vmem:[%s251 + $0xc0] sm:$0xff]
        %v330 = vld [vmem:[%s251 + $0xc8] sm:$0xff]
        %v331 = vld [vmem:[%s251 + $0xd0] sm:$0xff]
        %v332 = vld [vmem:[%s251 + $0xd8] sm:$0xff]
        %v333 = vld [vmem:[%s251 + $0xe0] sm:$0xff]
        %v334 = vld [vmem:[%s251 + $0xe8] sm:$0xff]
        %v335 = vld [vmem:[%s251 + $0xf0] sm:$0xff]
        %v336 = vld [vmem:[%s251 + $0xf8] sm:$0xff]
        %v337 = vld [vmem:[%s251 + $0x100] sm:$0xff]
        %v338 = vld [vmem:[%s251 + $0x108] sm:$0xff]
        %v339 = vld [vmem:[%s251 + $0x110] sm:$0xff]
        %v340 = vld [vmem:[%s251 + $0x118] sm:$0xff]
        %v341 = vld [vmem:[%s251 + $0x120] sm:$0xff]
        %v342 = vld [vmem:[%s251 + $0x128] sm:$0xff]
        %v343 = vld [vmem:[%s251 + $0x130] sm:$0xff]
        %v344 = vld [vmem:[%s251 + $0x138] sm:$0xff]
        %v345 = vld [vmem:[%s251 + $0x140] sm:$0xff]
        %v346 = vld [vmem:[%s251 + $0x148] sm:$0xff]
        %v347 = vld [vmem:[%s251 + $0x150] sm:$0xff]
        %v348 = vld [vmem:[%s251 + $0x158] sm:$0xff]
        %v349 = vld [vmem:[%s251 + $0x160] sm:$0xff]
        %v350 = vld [vmem:[%s251 + $0x168] sm:$0xff]
        %v351 = vld [vmem:[%s251 + $0x170] sm:$0xff]
        %v352 = vld [vmem:[%s251 + $0x178] sm:$0xff]
        %v353 = vld [vmem:[%s251 + $0x180] sm:$0xff]
        %v354 = vld [vmem:[%s251 + $0x188] sm:$0xff]
        %v355 = vld [vmem:[%s251 + $0x190] sm:$0xff]
        %v356 = vld [vmem:[%s251 + $0x198] sm:$0xff]
        %v357 = vld [vmem:[%s251 + $0x1a0] sm:$0xff]
        %v358 = vld [vmem:[%s251 + $0x1a8] sm:$0xff]
        %v359 = vld [vmem:[%s251 + $0x1b0] sm:$0xff]
        %v360 = vld [vmem:[%s251 + $0x1b8] sm:$0xff]
        %v361 = vld [vmem:[%s251 + $0x1c0] sm:$0xff]
        %v362 = vld [vmem:[%s251 + $0x1c8] sm:$0xff]
        %v363 = vld [vmem:[%s251 + $0x1d0] sm:$0xff]
        %v364 = vld [vmem:[%s251 + $0x1d8] sm:$0xff]
        %v365 = vld [vmem:[%s251 + $0x1e0] sm:$0xff]
        %v366 = vld [vmem:[%s251 + $0x1e8] sm:$0xff]
        %v367 = vld [vmem:[%s251 + $0x1f0] sm:$0xff]
        %v368 = vld [vmem:[%s251 + $0x1f8] sm:$0xff]
        %v369 = vld [vmem:[%s251 + $0x200] sm:$0xff]
        %v370 = vld [vmem:[%s251 + $0x208] sm:$0xff]
        %v371 = vld [vmem:[%s251 + $0x210] sm:$0xff]
        %v372 = vld [vmem:[%s251 + $0x218] sm:$0xff]
        %v373 = vld [vmem:[%s251 + $0x220] sm:$0xff]
        %v374 = vld [vmem:[%s251 + $0x228] sm:$0xff]
        %v375 = vld [vmem:[%s251 + $0x230] sm:$0xff]
        %v376 = vld [vmem:[%s251 + $0x238] sm:$0xff]
        %v377 = vld [vmem:[%s251 + $0x240] sm:$0xff]
        %v378 = vld [vmem:[%s251 + $0x248] sm:$0xff]
        %v379 = vld [vmem:[%s251 + $0x250] sm:$0xff]
        %v380 = vld [vmem:[%s251 + $0x258] sm:$0xff]
        %v381 = vld [vmem:[%s251 + $0x260] sm:$0xff]
        %v382 = vld [vmem:[%s251 + $0x268] sm:$0xff]
        %v383 = vld [vmem:[%s251 + $0x270] sm:$0xff]
        %v384 = vld [vmem:[%s251 + $0x278] sm:$0xff]
        %v385 = vld [vmem:[%s251 + $0x280] sm:$0xff]
        %v386 = vld [vmem:[%s251 + $0x288] sm:$0xff]
        %v387 = vld [vmem:[%s251 + $0x290] sm:$0xff]
        %v388 = vld [vmem:[%s251 + $0x298] sm:$0xff]
        %v389 = vld [vmem:[%s251 + $0x2a0] sm:$0xff]
        %v390 = vld [vmem:[%s251 + $0x2a8] sm:$0xff]
        %v391 = vld [vmem:[%s251 + $0x2b0] sm:$0xff]
        %v392 = vld [vmem:[%s251 + $0x2b8] sm:$0xff]
        %v393 = vld [vmem:[%s251 + $0x2c0] sm:$0xff]
        %v394 = vld [vmem:[%s251 + $0x2c8] sm:$0xff]
        %v395 = vld [vmem:[%s251 + $0x2d0] sm:$0xff]
        %v396 = vld [vmem:[%s251 + $0x2d8] sm:$0xff]
        %v397 = vld [vmem:[%s251 + $0x2e0] sm:$0xff]
        %v398 = vld [vmem:[%s251 + $0x2e8] sm:$0xff]
        %v399 = vld [vmem:[%s251 + $0x2f0] sm:$0xff]
        %v400 = vld [vmem:[%s251 + $0x2f8] sm:$0xff]
        %v419 = vunpack.c.l.b16 %v287
        %v420 = vunpack.c.h.b16 %v287
        %v421 = vunpack.c.l.b16 %v288
        %v422 = vunpack.c.h.b16 %v288
        %v423 = vunpack.c.l.b16 %v289
        %v424 = vunpack.c.h.b16 %v289
        %v425 = vunpack.c.l.b16 %v290
        %v426 = vunpack.c.h.b16 %v290
        %v427 = vunpack.c.l.b16 %v291
        %v428 = vunpack.c.h.b16 %v291
        %v429 = vunpack.c.l.b16 %v292
        %v430 = vunpack.c.h.b16 %v292
        %v431 = vunpack.c.l.b16 %v293
        %v432 = vunpack.c.h.b16 %v293
        %v433 = vunpack.c.l.b16 %v294
        %v434 = vunpack.c.h.b16 %v294
        %v435 = vunpack.c.l.b16 %v295
        %v436 = vunpack.c.h.b16 %v295
        %v437 = vunpack.c.l.b16 %v296
        %v438 = vunpack.c.h.b16 %v296
        %v439 = vunpack.c.l.b16 %v297
        %v440 = vunpack.c.h.b16 %v297
        %v441 = vunpack.c.l.b16 %v298
        %v442 = vunpack.c.h.b16 %v298
        %v443 = vunpack.c.l.b16 %v299
        %v444 = vunpack.c.h.b16 %v299
        %v445 = vunpack.c.l.b16 %v300
        %v446 = vunpack.c.h.b16 %v300
        %v447 = vunpack.c.l.b16 %v301
        %v448 = vunpack.c.h.b16 %v301
        %v449 = vunpack.c.l.b16 %v302
        %v450 = vunpack.c.h.b16 %v302
        %v451 = vunpack.c.l.b16 %v303
        %v452 = vunpack.c.h.b16 %v303
        %v453 = vunpack.c.l.b16 %v304
        %v454 = vunpack.c.h.b16 %v304
        %v455 = vpack.c.b16 %v425, %v419
        %v456 = vpack.c.b16 %v426, %v420
        %v457 = vpack.c.b16 %v427, %v421
        %v458 = vpack.c.b16 %v428, %v422
        %v459 = vpack.c.b16 %v429, %v423
        %v460 = vpack.c.b16 %v430, %v424
        %v461 = vpack.c.b16 %v437, %v431
        %v462 = vpack.c.b16 %v438, %v432
        %v463 = vpack.c.b16 %v439, %v433
        %v464 = vpack.c.b16 %v440, %v434
        %v465 = vpack.c.b16 %v441, %v435
        %v466 = vpack.c.b16 %v442, %v436
        %v467 = vpack.c.b16 %v449, %v443
        %v468 = vpack.c.b16 %v450, %v444
        %v469 = vpack.c.b16 %v451, %v445
        %v470 = vpack.c.b16 %v452, %v446
        %v471 = vpack.c.b16 %v453, %v447
        %v472 = vpack.c.b16 %v454, %v448
        %v587 = vunpack.c.l.b16 %v305
        %v588 = vunpack.c.h.b16 %v305
        %v589 = vunpack.c.l.b16 %v306
        %v590 = vunpack.c.h.b16 %v306
        %v591 = vunpack.c.l.b16 %v307
        %v592 = vunpack.c.h.b16 %v307
        %v593 = vunpack.c.l.b16 %v308
        %v594 = vunpack.c.h.b16 %v308
        %v595 = vunpack.c.l.b16 %v309
        %v596 = vunpack.c.h.b16 %v309
        %v597 = vunpack.c.l.b16 %v310
        %v598 = vunpack.c.h.b16 %v310
        %v599 = vunpack.c.l.b16 %v311
        %v600 = vunpack.c.h.b16 %v311
        %v601 = vunpack.c.l.b16 %v312
        %v602 = vunpack.c.h.b16 %v312
        %v603 = vunpack.c.l.b16 %v313
        %v604 = vunpack.c.h.b16 %v313
        %v605 = vunpack.c.l.b16 %v314
        %v606 = vunpack.c.h.b16 %v314
        %v607 = vunpack.c.l.b16 %v315
        %v608 = vunpack.c.h.b16 %v315
        %v609 = vunpack.c.l.b16 %v316
        %v610 = vunpack.c.h.b16 %v316
        %v611 = vunpack.c.l.b16 %v317
        %v612 = vunpack.c.h.b16 %v317
        %v613 = vunpack.c.l.b16 %v318
        %v614 = vunpack.c.h.b16 %v318
        %v615 = vunpack.c.l.b16 %v319
        %v616 = vunpack.c.h.b16 %v319
        %v617 = vunpack.c.l.b16 %v320
        %v618 = vunpack.c.h.b16 %v320
        %v619 = vunpack.c.l.b16 %v321
        %v620 = vunpack.c.h.b16 %v321
        %v621 = vunpack.c.l.b16 %v322
        %v622 = vunpack.c.h.b16 %v322
        %v623 = vunpack.c.l.b16 %v323
        %v624 = vunpack.c.h.b16 %v323
        %v625 = vunpack.c.l.b16 %v324
        %v626 = vunpack.c.h.b16 %v324
        %v627 = vunpack.c.l.b16 %v325
        %v628 = vunpack.c.h.b16 %v325
        %v629 = vunpack.c.l.b16 %v326
        %v630 = vunpack.c.h.b16 %v326
        %v631 = vunpack.c.l.b16 %v327
        %v632 = vunpack.c.h.b16 %v327
        %v633 = vunpack.c.l.b16 %v328
        %v634 = vunpack.c.h.b16 %v328
        %v635 = vunpack.c.l.b16 %v329
        %v636 = vunpack.c.h.b16 %v329
        %v637 = vunpack.c.l.b16 %v330
        %v638 = vunpack.c.h.b16 %v330
        %v639 = vunpack.c.l.b16 %v331
        %v640 = vunpack.c.h.b16 %v331
        %v641 = vunpack.c.l.b16 %v332
        %v642 = vunpack.c.h.b16 %v332
        %v643 = vunpack.c.l.b16 %v333
        %v644 = vunpack.c.h.b16 %v333
        %v645 = vunpack.c.l.b16 %v334
        %v646 = vunpack.c.h.b16 %v334
        %v647 = vunpack.c.l.b16 %v335
        %v648 = vunpack.c.h.b16 %v335
        %v649 = vunpack.c.l.b16 %v336
        %v650 = vunpack.c.h.b16 %v336
        %v651 = vunpack.c.l.b16 %v337
        %v652 = vunpack.c.h.b16 %v337
        %v653 = vunpack.c.l.b16 %v338
        %v654 = vunpack.c.h.b16 %v338
        %v655 = vunpack.c.l.b16 %v339
        %v656 = vunpack.c.h.b16 %v339
        %v657 = vunpack.c.l.b16 %v340
        %v658 = vunpack.c.h.b16 %v340
        %v659 = vunpack.c.l.b16 %v341
        %v660 = vunpack.c.h.b16 %v341
        %v661 = vunpack.c.l.b16 %v342
        %v662 = vunpack.c.h.b16 %v342
        %v663 = vunpack.c.l.b16 %v343
        %v664 = vunpack.c.h.b16 %v343
        %v665 = vunpack.c.l.b16 %v344
        %v666 = vunpack.c.h.b16 %v344
        %v667 = vunpack.c.l.b16 %v345
        %v668 = vunpack.c.h.b16 %v345
        %v669 = vunpack.c.l.b16 %v346
        %v670 = vunpack.c.h.b16 %v346
        %v671 = vunpack.c.l.b16 %v347
        %v672 = vunpack.c.h.b16 %v347
        %v673 = vunpack.c.l.b16 %v348
        %v674 = vunpack.c.h.b16 %v348
        %v675 = vunpack.c.l.b16 %v349
        %v676 = vunpack.c.h.b16 %v349
        %v677 = vunpack.c.l.b16 %v350
        %v678 = vunpack.c.h.b16 %v350
        %v679 = vunpack.c.l.b16 %v351
        %v680 = vunpack.c.h.b16 %v351
        %v681 = vunpack.c.l.b16 %v352
        %v682 = vunpack.c.h.b16 %v352
        %v683 = vunpack.c.l.b16 %v353
        %v684 = vunpack.c.h.b16 %v353
        %v685 = vunpack.c.l.b16 %v354
        %v686 = vunpack.c.h.b16 %v354
        %v687 = vunpack.c.l.b16 %v355
        %v688 = vunpack.c.h.b16 %v355
        %v689 = vunpack.c.l.b16 %v356
        %v690 = vunpack.c.h.b16 %v356
        %v691 = vunpack.c.l.b16 %v357
        %v692 = vunpack.c.h.b16 %v357
        %v693 = vunpack.c.l.b16 %v358
        %v694 = vunpack.c.h.b16 %v358
        %v695 = vunpack.c.l.b16 %v359
        %v696 = vunpack.c.h.b16 %v359
        %v697 = vunpack.c.l.b16 %v360
        %v698 = vunpack.c.h.b16 %v360
        %v699 = vunpack.c.l.b16 %v361
        %v700 = vunpack.c.h.b16 %v361
        %v701 = vunpack.c.l.b16 %v362
        %v702 = vunpack.c.h.b16 %v362
        %v703 = vunpack.c.l.b16 %v363
        %v704 = vunpack.c.h.b16 %v363
        %v705 = vunpack.c.l.b16 %v364
        %v706 = vunpack.c.h.b16 %v364
        %v707 = vunpack.c.l.b16 %v365
        %v708 = vunpack.c.h.b16 %v365
        %v709 = vunpack.c.l.b16 %v366
        %v710 = vunpack.c.h.b16 %v366
        %v711 = vunpack.c.l.b16 %v367
        %v712 = vunpack.c.h.b16 %v367
        %v713 = vunpack.c.l.b16 %v368
        %v714 = vunpack.c.h.b16 %v368
        %v715 = vunpack.c.l.b16 %v369
        %v716 = vunpack.c.h.b16 %v369
        %v717 = vunpack.c.l.b16 %v370
        %v718 = vunpack.c.h.b16 %v370
        %v719 = vunpack.c.l.b16 %v371
        %v720 = vunpack.c.h.b16 %v371
        %v721 = vunpack.c.l.b16 %v372
        %v722 = vunpack.c.h.b16 %v372
        %v723 = vunpack.c.l.b16 %v373
        %v724 = vunpack.c.h.b16 %v373
        %v725 = vunpack.c.l.b16 %v374
        %v726 = vunpack.c.h.b16 %v374
        %v727 = vunpack.c.l.b16 %v375
        %v728 = vunpack.c.h.b16 %v375
        %v729 = vunpack.c.l.b16 %v376
        %v730 = vunpack.c.h.b16 %v376
        %v731 = vunpack.c.l.b16 %v377
        %v732 = vunpack.c.h.b16 %v377
        %v733 = vunpack.c.l.b16 %v378
        %v734 = vunpack.c.h.b16 %v378
        %v735 = vunpack.c.l.b16 %v379
        %v736 = vunpack.c.h.b16 %v379
        %v737 = vunpack.c.l.b16 %v380
        %v738 = vunpack.c.h.b16 %v380
        %v739 = vunpack.c.l.b16 %v381
        %v740 = vunpack.c.h.b16 %v381
        %v741 = vunpack.c.l.b16 %v382
        %v742 = vunpack.c.h.b16 %v382
        %v743 = vunpack.c.l.b16 %v383
        %v744 = vunpack.c.h.b16 %v383
        %v745 = vunpack.c.l.b16 %v384
        %v746 = vunpack.c.h.b16 %v384
        %v747 = vunpack.c.l.b16 %v385
        %v748 = vunpack.c.h.b16 %v385
        %v749 = vunpack.c.l.b16 %v386
        %v750 = vunpack.c.h.b16 %v386
        %v751 = vunpack.c.l.b16 %v387
        %v752 = vunpack.c.h.b16 %v387
        %v753 = vunpack.c.l.b16 %v388
        %v754 = vunpack.c.h.b16 %v388
        %v755 = vunpack.c.l.b16 %v389
        %v756 = vunpack.c.h.b16 %v389
        %v757 = vunpack.c.l.b16 %v390
        %v758 = vunpack.c.h.b16 %v390
        %v759 = vunpack.c.l.b16 %v391
        %v760 = vunpack.c.h.b16 %v391
        %v761 = vunpack.c.l.b16 %v392
        %v762 = vunpack.c.h.b16 %v392
        %v763 = vunpack.c.l.b16 %v393
        %v764 = vunpack.c.h.b16 %v393
        %v765 = vunpack.c.l.b16 %v394
        %v766 = vunpack.c.h.b16 %v394
        %v767 = vunpack.c.l.b16 %v395
        %v768 = vunpack.c.h.b16 %v395
        %v769 = vunpack.c.l.b16 %v396
        %v770 = vunpack.c.h.b16 %v396
        %v771 = vunpack.c.l.b16 %v397
        %v772 = vunpack.c.h.b16 %v397
        %v773 = vunpack.c.l.b16 %v398
        %v774 = vunpack.c.h.b16 %v398
        %v775 = vunpack.c.l.b16 %v399
        %v776 = vunpack.c.h.b16 %v399
        %v777 = vunpack.c.l.b16 %v400
        %v778 = vunpack.c.h.b16 %v400
        %v779 = vpack.c.b16 %v589, %v587
        %v780 = vpack.c.b16 %v590, %v588
        %v781 = vpack.c.b16 %v593, %v591
        %v782 = vpack.c.b16 %v594, %v592
        %v783 = vpack.c.b16 %v597, %v595
        %v784 = vpack.c.b16 %v598, %v596
        %v785 = vpack.c.b16 %v601, %v599
        %v786 = vpack.c.b16 %v602, %v600
        %v787 = vpack.c.b16 %v605, %v603
        %v788 = vpack.c.b16 %v606, %v604
        %v789 = vpack.c.b16 %v609, %v607
        %v790 = vpack.c.b16 %v610, %v608
        %v791 = vpack.c.b16 %v613, %v611
        %v792 = vpack.c.b16 %v614, %v612
        %v793 = vpack.c.b16 %v617, %v615
        %v794 = vpack.c.b16 %v618, %v616
        %v795 = vpack.c.b16 %v621, %v619
        %v796 = vpack.c.b16 %v622, %v620
        %v797 = vpack.c.b16 %v625, %v623
        %v798 = vpack.c.b16 %v626, %v624
        %v799 = vpack.c.b16 %v629, %v627
        %v800 = vpack.c.b16 %v630, %v628
        %v801 = vpack.c.b16 %v633, %v631
        %v802 = vpack.c.b16 %v634, %v632
        %v803 = vpack.c.b16 %v637, %v635
        %v804 = vpack.c.b16 %v638, %v636
        %v805 = vpack.c.b16 %v641, %v639
        %v806 = vpack.c.b16 %v642, %v640
        %v807 = vpack.c.b16 %v645, %v643
        %v808 = vpack.c.b16 %v646, %v644
        %v809 = vpack.c.b16 %v649, %v647
        %v810 = vpack.c.b16 %v650, %v648
        %v811 = vpack.c.b16 %v653, %v651
        %v812 = vpack.c.b16 %v654, %v652
        %v813 = vpack.c.b16 %v657, %v655
        %v814 = vpack.c.b16 %v658, %v656
        %v815 = vpack.c.b16 %v661, %v659
        %v816 = vpack.c.b16 %v662, %v660
        %v817 = vpack.c.b16 %v665, %v663
        %v818 = vpack.c.b16 %v666, %v664
        %v819 = vpack.c.b16 %v669, %v667
        %v820 = vpack.c.b16 %v670, %v668
        %v821 = vpack.c.b16 %v673, %v671
        %v822 = vpack.c.b16 %v674, %v672
        %v823 = vpack.c.b16 %v677, %v675
        %v824 = vpack.c.b16 %v678, %v676
        %v825 = vpack.c.b16 %v681, %v679
        %v826 = vpack.c.b16 %v682, %v680
        %v827 = vpack.c.b16 %v685, %v683
        %v828 = vpack.c.b16 %v686, %v684
        %v829 = vpack.c.b16 %v689, %v687
        %v830 = vpack.c.b16 %v690, %v688
        %v831 = vpack.c.b16 %v693, %v691
        %v832 = vpack.c.b16 %v694, %v692
        %v833 = vpack.c.b16 %v697, %v695
        %v834 = vpack.c.b16 %v698, %v696
        %v835 = vpack.c.b16 %v701, %v699
        %v836 = vpack.c.b16 %v702, %v700
        %v837 = vpack.c.b16 %v705, %v703
        %v838 = vpack.c.b16 %v706, %v704
        %v839 = vpack.c.b16 %v709, %v707
        %v840 = vpack.c.b16 %v710, %v708
        %v841 = vpack.c.b16 %v713, %v711
        %v842 = vpack.c.b16 %v714, %v712
        %v843 = vpack.c.b16 %v717, %v715
        %v844 = vpack.c.b16 %v718, %v716
        %v845 = vpack.c.b16 %v721, %v719
        %v846 = vpack.c.b16 %v722, %v720
        %v847 = vpack.c.b16 %v725, %v723
        %v848 = vpack.c.b16 %v726, %v724
        %v849 = vpack.c.b16 %v729, %v727
        %v850 = vpack.c.b16 %v730, %v728
        %v851 = vpack.c.b16 %v733, %v731
        %v852 = vpack.c.b16 %v734, %v732
        %v853 = vpack.c.b16 %v737, %v735
        %v854 = vpack.c.b16 %v738, %v736
        %v855 = vpack.c.b16 %v741, %v739
        %v856 = vpack.c.b16 %v742, %v740
        %v857 = vpack.c.b16 %v745, %v743
        %v858 = vpack.c.b16 %v746, %v744
        %v859 = vpack.c.b16 %v749, %v747
        %v860 = vpack.c.b16 %v750, %v748
        %v861 = vpack.c.b16 %v753, %v751
        %v862 = vpack.c.b16 %v754, %v752
        %v863 = vpack.c.b16 %v757, %v755
        %v864 = vpack.c.b16 %v758, %v756
        %v865 = vpack.c.b16 %v761, %v759
        %v866 = vpack.c.b16 %v762, %v760
        %v867 = vpack.c.b16 %v765, %v763
        %v868 = vpack.c.b16 %v766, %v764
        %v869 = vpack.c.b16 %v769, %v767
        %v870 = vpack.c.b16 %v770, %v768
        %v871 = vpack.c.b16 %v773, %v771
        %v872 = vpack.c.b16 %v774, %v772
        %v873 = vpack.c.b16 %v777, %v775
        %v874 = vpack.c.b16 %v778, %v776
        %971 = vmatprep.subr.bf16.mxu0 %v780
        %972 = vmatpush1.bf16.msra.mxu0 %v779
        %973 = vmatprep.subr.bf16.mxu0 %v782
        %974 = vmatpush1.bf16.msra.mxu0 %v781
        %975 = vmatprep.subr.bf16.mxu0 %v784
        %976 = vmatpush1.bf16.msra.mxu0 %v783
        %977 = vmatprep.subr.bf16.mxu0 %v786
        %978 = vmatpush1.bf16.msra.mxu0 %v785
        %979 = vmatprep.subr.bf16.mxu0 %v788
        %980 = vmatpush1.bf16.msra.mxu0 %v787
        %981 = vmatprep.subr.bf16.mxu0 %v790
        %982 = vmatpush1.bf16.msra.mxu0 %v789
        %983 = vmatprep.subr.bf16.mxu0 %v792
        %984 = vmatpush1.bf16.msra.mxu0 %v791
        %985 = vmatprep.subr.bf16.mxu0 %v794
        %986 = vmatpush1.bf16.msra.mxu0 %v793
        %987 = vmatprep.subr.bf16.mxu0 %v796
        %988 = vmatpush1.bf16.msra.mxu0 %v795
        %989 = vmatprep.subr.bf16.mxu0 %v798
        %990 = vmatpush1.bf16.msra.mxu0 %v797
        %991 = vmatprep.subr.bf16.mxu0 %v800
        %992 = vmatpush1.bf16.msra.mxu0 %v799
        %993 = vmatprep.subr.bf16.mxu0 %v802
        %994 = vmatpush1.bf16.msra.mxu0 %v801
        %995 = vmatprep.subr.bf16.mxu0 %v804
        %996 = vmatpush1.bf16.msra.mxu0 %v803
        %997 = vmatprep.subr.bf16.mxu0 %v806
        %998 = vmatpush1.bf16.msra.mxu0 %v805
        %999 = vmatprep.subr.bf16.mxu0 %v808
        %1000 = vmatpush1.bf16.msra.mxu0 %v807
        %1001 = vmatprep.subr.bf16.mxu0 %v810
        %1002 = vmatpush1.bf16.msra.mxu0 %v809
        %1003 = vmatprep.mubr.bf16.mxu0 %v456
        %1004 = vmatmul.mubr.bf16.gmra.mrb[0].mxu0 %v455
        %v1005 = vpop.f32.mrb[0].mxu0
        %v1006 = vadd.f32 0.0, %v1005
        %v1007 = vpop.f32.mrb[0].mxu0
        %v1008 = vadd.f32 0.0, %v1007
        %v1009 = vpop.f32.mrb[0].mxu0
        %v1010 = vadd.f32 0.0, %v1009
        %v1011 = vpop.f32.mrb[0].mxu0
        %v1012 = vadd.f32 0.0, %v1011
        %1013 = vmatprep.mubr.bf16.mxu0 %v462
        %1014 = vmatmul.mubr.bf16.gmra.mrb[0].mxu0 %v461
        %v1015 = vpop.f32.mrb[0].mxu0
        %v1016 = vadd.f32 0.0, %v1015
        %v1017 = vpop.f32.mrb[0].mxu0
        %v1018 = vadd.f32 0.0, %v1017
        %v1019 = vpop.f32.mrb[0].mxu0
        %v1020 = vadd.f32 0.0, %v1019
        %v1021 = vpop.f32.mrb[0].mxu0
        %v1022 = vadd.f32 0.0, %v1021
        %1023 = vmatprep.mubr.bf16.mxu0 %v468
        %1024 = vmatmul.mubr.bf16.gmra.mrb[0].mxu0 %v467
        %v1025 = vpop.f32.mrb[0].mxu0
        %v1026 = vadd.f32 0.0, %v1025
        %v1027 = vpop.f32.mrb[0].mxu0
        %v1028 = vadd.f32 0.0, %v1027
        %v1029 = vpop.f32.mrb[0].mxu0
        %v1030 = vadd.f32 0.0, %v1029
        %v1031 = vpop.f32.mrb[0].mxu0
        %v1032 = vadd.f32 0.0, %v1031
        %1033 = vdwg.mxu0
        %1034 = vmatprep.subr.bf16.mxu0 %v812
        %1035 = vmatpush1.bf16.msra.mxu0 %v811
        %1036 = vmatprep.subr.bf16.mxu0 %v814
        %1037 = vmatpush1.bf16.msra.mxu0 %v813
        %1038 = vmatprep.subr.bf16.mxu0 %v816
        %1039 = vmatpush1.bf16.msra.mxu0 %v815
        %1040 = vmatprep.subr.bf16.mxu0 %v818
        %1041 = vmatpush1.bf16.msra.mxu0 %v817
        %1042 = vmatprep.subr.bf16.mxu0 %v820
        %1043 = vmatpush1.bf16.msra.mxu0 %v819
        %1044 = vmatprep.subr.bf16.mxu0 %v822
        %1045 = vmatpush1.bf16.msra.mxu0 %v821
        %1046 = vmatprep.subr.bf16.mxu0 %v824
        %1047 = vmatpush1.bf16.msra.mxu0 %v823
        %1048 = vmatprep.subr.bf16.mxu0 %v826
        %1049 = vmatpush1.bf16.msra.mxu0 %v825
        %1050 = vmatprep.subr.bf16.mxu0 %v828
        %1051 = vmatpush1.bf16.msra.mxu0 %v827
        %1052 = vmatprep.subr.bf16.mxu0 %v830
        %1053 = vmatpush1.bf16.msra.mxu0 %v829
        %1054 = vmatprep.subr.bf16.mxu0 %v832
        %1055 = vmatpush1.bf16.msra.mxu0 %v831
        %1056 = vmatprep.subr.bf16.mxu0 %v834
        %1057 = vmatpush1.bf16.msra.mxu0 %v833
        %1058 = vmatprep.subr.bf16.mxu0 %v836
        %1059 = vmatpush1.bf16.msra.mxu0 %v835
        %1060 = vmatprep.subr.bf16.mxu0 %v838
        %1061 = vmatpush1.bf16.msra.mxu0 %v837
        %1062 = vmatprep.subr.bf16.mxu0 %v840
        %1063 = vmatpush1.bf16.msra.mxu0 %v839
        %1064 = vmatprep.subr.bf16.mxu0 %v842
        %1065 = vmatpush1.bf16.msra.mxu0 %v841
        %1066 = vmatprep.mubr.bf16.mxu0 %v458
        %1067 = vmatmul.mubr.bf16.gmra.mrb[0].mxu0 %v457
        %v1068 = vpop.f32.mrb[0].mxu0
        %v1069 = vadd.f32 %v1006, %v1068
        %v1070 = vpop.f32.mrb[0].mxu0
        %v1071 = vadd.f32 %v1008, %v1070
        %v1072 = vpop.f32.mrb[0].mxu0
        %v1073 = vadd.f32 %v1010, %v1072
        %v1074 = vpop.f32.mrb[0].mxu0
        %v1075 = vadd.f32 %v1012, %v1074
        %1076 = vmatprep.mubr.bf16.mxu0 %v464
        %1077 = vmatmul.mubr.bf16.gmra.mrb[0].mxu0 %v463
        %v1078 = vpop.f32.mrb[0].mxu0
        %v1079 = vadd.f32 %v1016, %v1078
        %v1080 = vpop.f32.mrb[0].mxu0
        %v1081 = vadd.f32 %v1018, %v1080
        %v1082 = vpop.f32.mrb[0].mxu0
        %v1083 = vadd.f32 %v1020, %v1082
        %v1084 = vpop.f32.mrb[0].mxu0
        %v1085 = vadd.f32 %v1022, %v1084
        %1086 = vmatprep.mubr.bf16.mxu0 %v470
        %1087 = vmatmul.mubr.bf16.gmra.mrb[0].mxu0 %v469
        %v1088 = vpop.f32.mrb[0].mxu0
        %v1089 = vadd.f32 %v1026, %v1088
        %v1090 = vpop.f32.mrb[0].mxu0
        %v1091 = vadd.f32 %v1028, %v1090
        %v1092 = vpop.f32.mrb[0].mxu0
        %v1093 = vadd.f32 %v1030, %v1092
        %v1094 = vpop.f32.mrb[0].mxu0
        %v1095 = vadd.f32 %v1032, %v1094
        %1096 = vdwg.mxu0
        %1097 = vmatprep.subr.bf16.mxu0 %v844
        %1098 = vmatpush1.bf16.msra.mxu0 %v843
        %1099 = vmatprep.subr.bf16.mxu0 %v846
        %1100 = vmatpush1.bf16.msra.mxu0 %v845
        %1101 = vmatprep.subr.bf16.mxu0 %v848
        %1102 = vmatpush1.bf16.msra.mxu0 %v847
        %1103 = vmatprep.subr.bf16.mxu0 %v850
        %1104 = vmatpush1.bf16.msra.mxu0 %v849
        %1105 = vmatprep.subr.bf16.mxu0 %v852
        %1106 = vmatpush1.bf16.msra.mxu0 %v851
        %1107 = vmatprep.subr.bf16.mxu0 %v854
        %1108 = vmatpush1.bf16.msra.mxu0 %v853
        %1109 = vmatprep.subr.bf16.mxu0 %v856
        %1110 = vmatpush1.bf16.msra.mxu0 %v855
        %1111 = vmatprep.subr.bf16.mxu0 %v858
        %1112 = vmatpush1.bf16.msra.mxu0 %v857
        %1113 = vmatprep.subr.bf16.mxu0 %v860
        %1114 = vmatpush1.bf16.msra.mxu0 %v859
        %1115 = vmatprep.subr.bf16.mxu0 %v862
        %1116 = vmatpush1.bf16.msra.mxu0 %v861
        %1117 = vmatprep.subr.bf16.mxu0 %v864
        %1118 = vmatpush1.bf16.msra.mxu0 %v863
        %1119 = vmatprep.subr.bf16.mxu0 %v866
        %1120 = vmatpush1.bf16.msra.mxu0 %v865
        %1121 = vmatprep.subr.bf16.mxu0 %v868
        %1122 = vmatpush1.bf16.msra.mxu0 %v867
        %1123 = vmatprep.subr.bf16.mxu0 %v870
        %1124 = vmatpush1.bf16.msra.mxu0 %v869
        %1125 = vmatprep.subr.bf16.mxu0 %v872
        %1126 = vmatpush1.bf16.msra.mxu0 %v871
        %1127 = vmatprep.subr.bf16.mxu0 %v874
        %1128 = vmatpush1.bf16.msra.mxu0 %v873
        %1129 = vmatprep.mubr.bf16.mxu0 %v460
        %1130 = vmatmul.mubr.bf16.gmra.mrb[0].mxu0 %v459
        %v1131 = vpop.f32.mrb[0].mxu0
        %v1132 = vadd.f32 %v1069, %v1131
        %v1133 = vpop.f32.mrb[0].mxu0
        %v1134 = vadd.f32 %v1071, %v1133
        %v1135 = vpop.f32.mrb[0].mxu0
        %v1136 = vadd.f32 %v1073, %v1135
        %v1137 = vpop.f32.mrb[0].mxu0
        %v1138 = vadd.f32 %v1075, %v1137
        %1139 = vmatprep.mubr.bf16.mxu0 %v466
        %1140 = vmatmul.mubr.bf16.gmra.mrb[0].mxu0 %v465
        %v1141 = vpop.f32.mrb[0].mxu0
        %v1142 = vadd.f32 %v1079, %v1141
        %v1143 = vpop.f32.mrb[0].mxu0
        %v1144 = vadd.f32 %v1081, %v1143
        %v1145 = vpop.f32.mrb[0].mxu0
        %v1146 = vadd.f32 %v1083, %v1145
        %v1147 = vpop.f32.mrb[0].mxu0
        %v1148 = vadd.f32 %v1085, %v1147
        %1149 = vmatprep.mubr.bf16.mxu0 %v472
        %1150 = vmatmul.mubr.bf16.gmra.mrb[0].mxu0 %v471
        %v1151 = vpop.f32.mrb[0].mxu0
        %v1152 = vadd.f32 %v1089, %v1151
        %v1153 = vpop.f32.mrb[0].mxu0
        %v1154 = vadd.f32 %v1091, %v1153
        %v1155 = vpop.f32.mrb[0].mxu0
        %v1156 = vadd.f32 %v1093, %v1155
        %v1157 = vpop.f32.mrb[0].mxu0
        %v1158 = vadd.f32 %v1095, %v1157
        %1159 = vdwg.mxu0
        %s1160 = smul.u32 %s22, 12
        %s1161 = smul.addr %s1160, 8
        %s1162 = scalar_lea.vmem [#allocation2], %s1161
        %1163 = vst [vmem:[%s1162] sm:$0xff] %v1132
        %1164 = vst [vmem:[%s1162 + $0x8] sm:$0xff] %v1134
        %1165 = vst [vmem:[%s1162 + $0x10] sm:$0xff] %v1136
        %1166 = vst [vmem:[%s1162 + $0x18] sm:$0xff] %v1138
        %1167 = vst [vmem:[%s1162 + $0x20] sm:$0xff] %v1142
        %1168 = vst [vmem:[%s1162 + $0x28] sm:$0xff] %v1144
        %1169 = vst [vmem:[%s1162 + $0x30] sm:$0xff] %v1146
        %1170 = vst [vmem:[%s1162 + $0x38] sm:$0xff] %v1148
        %1171 = vst [vmem:[%s1162 + $0x40] sm:$0xff] %v1152
        %1172 = vst [vmem:[%s1162 + $0x48] sm:$0xff] %v1154
        %1173 = vst [vmem:[%s1162 + $0x50] sm:$0xff] %v1156
        %1174 = vst [vmem:[%s1162 + $0x58] sm:$0xff] %v1158
        %p1175 = scmp.eq.s32.totalorder %s22, 3
        // Predicated region
        $region61: #{tpu_custom_call.1} parent=39 // pred_check
          %p1176 = pneg %p1175
        $region62: #{tpu_custom_call.1} parent=39 // pred_check_branch
          %1178 = sbr.rel (%p1176) target = $region64
        $region63: #{tpu_custom_call.1} parent=39 // pred_region
          %v1179 = vld [vmem:[#allocation2] sm:$0xff]
          %v1180 = vld [vmem:[#allocation2 + $0x8] sm:$0xff]
          %v1181 = vld [vmem:[#allocation2 + $0x10] sm:$0xff]
          %v1182 = vld [vmem:[#allocation2 + $0x18] sm:$0xff]
          %v1183 = vld [vmem:[#allocation2 + $0x20] sm:$0xff]
          %v1184 = vld [vmem:[#allocation2 + $0x28] sm:$0xff]
          %v1185 = vld [vmem:[#allocation2 + $0x30] sm:$0xff]
          %v1186 = vld [vmem:[#allocation2 + $0x38] sm:$0xff]
          %v1187 = vld [vmem:[#allocation2 + $0x40] sm:$0xff]
          %v1188 = vld [vmem:[#allocation2 + $0x48] sm:$0xff]
          %v1189 = vld [vmem:[#allocation2 + $0x50] sm:$0xff]
          %v1190 = vld [vmem:[#allocation2 + $0x58] sm:$0xff]
          %s1191 = scalar_lea.vmem [#allocation2], 96
          %v1192 = vld [vmem:[%s1191] sm:$0xff]
          %v1193 = vld [vmem:[%s1191 + $0x8] sm:$0xff]
          %v1194 = vld [vmem:[%s1191 + $0x10] sm:$0xff]
          %v1195 = vld [vmem:[%s1191 + $0x18] sm:$0xff]
          %v1196 = vld [vmem:[%s1191 + $0x20] sm:$0xff]
          %v1197 = vld [vmem:[%s1191 + $0x28] sm:$0xff]
          %v1198 = vld [vmem:[%s1191 + $0x30] sm:$0xff]
          %v1199 = vld [vmem:[%s1191 + $0x38] sm:$0xff]
          %v1200 = vld [vmem:[%s1191 + $0x40] sm:$0xff]
          %v1201 = vld [vmem:[%s1191 + $0x48] sm:$0xff]
          %v1202 = vld [vmem:[%s1191 + $0x50] sm:$0xff]
          %v1203 = vld [vmem:[%s1191 + $0x58] sm:$0xff]
          %s1204 = scalar_lea.vmem [#allocation2], 192
          %v1205 = vld [vmem:[%s1204] sm:$0xff]
          %v1206 = vld [vmem:[%s1204 + $0x8] sm:$0xff]
          %v1207 = vld [vmem:[%s1204 + $0x10] sm:$0xff]
          %v1208 = vld [vmem:[%s1204 + $0x18] sm:$0xff]
          %v1209 = vld [vmem:[%s1204 + $0x20] sm:$0xff]
          %v1210 = vld [vmem:[%s1204 + $0x28] sm:$0xff]
          %v1211 = vld [vmem:[%s1204 + $0x30] sm:$0xff]
          %v1212 = vld [vmem:[%s1204 + $0x38] sm:$0xff]
          %v1213 = vld [vmem:[%s1204 + $0x40] sm:$0xff]
          %v1214 = vld [vmem:[%s1204 + $0x48] sm:$0xff]
          %v1215 = vld [vmem:[%s1204 + $0x50] sm:$0xff]
          %v1216 = vld [vmem:[%s1204 + $0x58] sm:$0xff]
          %s1217 = scalar_lea.vmem [#allocation2], 288
          %v1218 = vld [vmem:[%s1217] sm:$0xff]
          %v1219 = vld [vmem:[%s1217 + $0x8] sm:$0xff]
          %v1220 = vld [vmem:[%s1217 + $0x10] sm:$0xff]
          %v1221 = vld [vmem:[%s1217 + $0x18] sm:$0xff]
          %v1222 = vld [vmem:[%s1217 + $0x20] sm:$0xff]
          %v1223 = vld [vmem:[%s1217 + $0x28] sm:$0xff]
          %v1224 = vld [vmem:[%s1217 + $0x30] sm:$0xff]
          %v1225 = vld [vmem:[%s1217 + $0x38] sm:$0xff]
          %v1226 = vld [vmem:[%s1217 + $0x40] sm:$0xff]
          %v1227 = vld [vmem:[%s1217 + $0x48] sm:$0xff]
          %v1228 = vld [vmem:[%s1217 + $0x50] sm:$0xff]
          %v1229 = vld [vmem:[%s1217 + $0x58] sm:$0xff]
          %v1230 = vld [vmem:[#allocation8] sm:$0x3]
          %vm1237 = vcmask 1046528
          %v1238 = vrot.slane %v1179, 1
          %v1239 = vrot.slane %v1181, 1
          %v1240 = vsel %vm1237, %v1238, %v1239
          %v1241 = vrot.slane %v1183, 1
          %v1242 = vsel %vm1237, %v1239, %v1241
          %v1243 = vrot.slane %v1185, 1
          %v1244 = vrot.slane %v1187, 1
          %v1245 = vsel %vm1237, %v1243, %v1244
          %v1246 = vrot.slane %v1189, 1
          %v1247 = vsel %vm1237, %v1244, %v1246
          %1248 = vrot.lane.b32.xlu0 %v1240, 64
          %v1249 = vpop.permute.xlu0 %1248
          %1250 = vrot.lane.b32.xlu0 %v1242, 64
          %v1251 = vpop.permute.xlu0 %1250
          %1252 = vrot.lane.b32.xlu0 %v1245, 64
          %v1253 = vpop.permute.xlu0 %1252
          %1254 = vrot.lane.b32.xlu0 %v1247, 64
          %v1255 = vpop.permute.xlu0 %1254
          %v1260 = vadd.f32 %v1179, %v1249
          %v1261 = vadd.f32 %v1181, %v1251
          %v1262 = vadd.f32 %v1185, %v1253
          %v1263 = vadd.f32 %v1187, %v1255
          %vm1270 = vcmask 1045504
          %v1271 = vrot.slane %v1180, 2
          %v1272 = vrot.slane %v1182, 2
          %v1273 = vsel %vm1270, %v1271, %v1272
          %v1274 = vrot.slane %v1184, 2
          %v1275 = vsel %vm1270, %v1272, %v1274
          %v1276 = vrot.slane %v1186, 2
          %v1277 = vrot.slane %v1188, 2
          %v1278 = vsel %vm1270, %v1276, %v1277
          %v1279 = vrot.slane %v1190, 2
          %v1280 = vsel %vm1270, %v1277, %v1279
          %v1285 = vadd.f32 %v1260, %v1273
          %v1286 = vadd.f32 %v1261, %v1275
          %v1287 = vadd.f32 %v1262, %v1278
          %v1288 = vadd.f32 %v1263, %v1280
          %v1290 = vlaneseq
          %v1291 = vshrl.u32 %v1290, 7
          %v1292 = vsub.s32 0, %v1291
          %v1293 = vrot.slane %v1230, %v1292
          %v1295 = vadd.f32 %v1285, %v1293
          %v1296 = vadd.f32 %v1286, %v1293
          %v1297 = vadd.f32 %v1287, %v1293
          %v1298 = vadd.f32 %v1288, %v1293
          %v1299 = vmax.f32 %v1295, 0.0
          %v1300 = vmax.f32 %v1296, 0.0
          %v1301 = vmax.f32 %v1297, 0.0
          %v1302 = vmax.f32 %v1298, 0.0
          %vm1303 = vcmask 523264
          %v1304 = vsel %vm1303, %v1299, -inf
          %v1305 = vsel %vm1303, %v1300, -inf
          %v1306 = vmax.f32 %v1304, %v1305
          %v1307 = vrot.slane %v1306, 4
          %v1308 = vmax.f32 %v1306, %v1307
          %v1309 = vrot.slane %v1308, 2
          %v1310 = vmax.f32 %v1308, %v1309
          %v1311 = vrot.slane %v1310, 1
          %v1312 = vmax.f32 %v1310, %v1311
          %v1313 = vsel %vm1303, %v1301, -inf
          %v1314 = vsel %vm1303, %v1302, -inf
          %v1315 = vmax.f32 %v1313, %v1314
          %v1316 = vrot.slane %v1315, 4
          %v1317 = vmax.f32 %v1315, %v1316
          %v1318 = vrot.slane %v1317, 2
          %v1319 = vmax.f32 %v1317, %v1318
          %v1320 = vrot.slane %v1319, 1
          %v1321 = vmax.f32 %v1319, %v1320
          %v1328 = vrot.slane %v1192, 1
          %v1329 = vrot.slane %v1194, 1
          %v1330 = vsel %vm1237, %v1328, %v1329
          %v1331 = vrot.slane %v1196, 1
          %v1332 = vsel %vm1237, %v1329, %v1331
          %v1333 = vrot.slane %v1198, 1
          %v1334 = vrot.slane %v1200, 1
          %v1335 = vsel %vm1237, %v1333, %v1334
          %v1336 = vrot.slane %v1202, 1
          %v1337 = vsel %vm1237, %v1334, %v1336
          %1338 = vrot.lane.b32.xlu0 %v1330, 64
          %v1339 = vpop.permute.xlu0 %1338
          %1340 = vrot.lane.b32.xlu0 %v1332, 64
          %v1341 = vpop.permute.xlu0 %1340
          %1342 = vrot.lane.b32.xlu0 %v1335, 64
          %v1343 = vpop.permute.xlu0 %1342
          %1344 = vrot.lane.b32.xlu0 %v1337, 64
          %v1345 = vpop.permute.xlu0 %1344
          %v1350 = vadd.f32 %v1180, %v1339
          %v1351 = vadd.f32 %v1182, %v1341
          %v1352 = vadd.f32 %v1186, %v1343
          %v1353 = vadd.f32 %v1188, %v1345
          %v1354 = vrot.slane %v1192, 2
          %v1355 = vrot.slane %v1194, 2
          %v1356 = vsel %vm1270, %v1354, %v1355
          %v1357 = vrot.slane %v1196, 2
          %v1358 = vsel %vm1270, %v1355, %v1357
          %v1359 = vrot.slane %v1198, 2
          %v1360 = vrot.slane %v1200, 2
          %v1361 = vsel %vm1270, %v1359, %v1360
          %v1362 = vrot.slane %v1202, 2
          %v1363 = vsel %vm1270, %v1360, %v1362
          %v1368 = vadd.f32 %v1350, %v1356
          %v1369 = vadd.f32 %v1351, %v1358
          %v1370 = vadd.f32 %v1352, %v1361
          %v1371 = vadd.f32 %v1353, %v1363
          %vm1378 = vcmask 1044480
          %v1379 = vrot.slane %v1193, 3
          %v1380 = vrot.slane %v1195, 3
          %v1381 = vsel %vm1378, %v1379, %v1380
          %v1382 = vrot.slane %v1197, 3
          %v1383 = vsel %vm1378, %v1380, %v1382
          %v1384 = vrot.slane %v1199, 3
          %v1385 = vrot.slane %v1201, 3
          %v1386 = vsel %vm1378, %v1384, %v1385
          %v1387 = vrot.slane %v1203, 3
          %v1388 = vsel %vm1378, %v1385, %v1387
          %1389 = vrot.lane.b32.xlu0 %v1381, 64
          %v1390 = vpop.permute.xlu0 %1389
          %1391 = vrot.lane.b32.xlu0 %v1383, 64
          %v1392 = vpop.permute.xlu0 %1391
          %1393 = vrot.lane.b32.xlu0 %v1386, 64
          %v1394 = vpop.permute.xlu0 %1393
          %1395 = vrot.lane.b32.xlu0 %v1388, 64
          %v1396 = vpop.permute.xlu0 %1395
          %v1401 = vadd.f32 %v1368, %v1390
          %v1402 = vadd.f32 %v1369, %v1392
          %v1403 = vadd.f32 %v1370, %v1394
          %v1404 = vadd.f32 %v1371, %v1396
          %vm1405 = vcmask 1043456
          %v1406 = vrot.slane %v1193, 4
          %v1407 = vrot.slane %v1195, 4
          %v1408 = vsel %vm1405, %v1406, %v1407
          %v1409 = vrot.slane %v1197, 4
          %v1410 = vsel %vm1405, %v1407, %v1409
          %v1411 = vrot.slane %v1199, 4
          %v1412 = vrot.slane %v1201, 4
          %v1413 = vsel %vm1405, %v1411, %v1412
          %v1414 = vrot.slane %v1203, 4
          %v1415 = vsel %vm1405, %v1412, %v1414
          %v1420 = vadd.f32 %v1401, %v1408
          %v1421 = vadd.f32 %v1402, %v1410
          %v1422 = vadd.f32 %v1403, %v1413
          %v1423 = vadd.f32 %v1404, %v1415
          %v1424 = vadd.f32 %v1420, %v1293
          %v1425 = vadd.f32 %v1421, %v1293
          %v1426 = vadd.f32 %v1422, %v1293
          %v1427 = vadd.f32 %v1423, %v1293
          %v1428 = vmax.f32 %v1424, 0.0
          %v1429 = vmax.f32 %v1425, 0.0
          %v1430 = vmax.f32 %v1426, 0.0
          %v1431 = vmax.f32 %v1427, 0.0
          %v1432 = vlaneseq
          %v1433 = vshrl.u32 %v1432, 7
          %v1434 = vadd.s32 %v1433, 8
          %vm1435 = vcmp.lt.s32.totalorder %v1433, 14
          %vm1436 = vcmp.lt.s32.totalorder %v1434, 14
          %v1437 = vsel %vm1435, 1, 0
          %v1438 = vsel %vm1436, 1, 0
          %vm1439 = vcmp.eq.s32.totalorder %v1437, 1
          %vm1440 = vcmp.eq.s32.totalorder %v1438, 1
          %v1441 = vsel %vm1439, %v1428, 0.0
          %v1442 = vsel %vm1440, %v1429, 0.0
          %v1443 = vsel %vm1439, %v1430, 0.0
          %v1444 = vsel %vm1440, %v1431, 0.0
          %vm1445 = vcmask 1048064
          %v1446 = vsel %vm1445, %v1441, -inf
          %v1447 = vsel %vm1445, %v1442, -inf
          %v1448 = vmax.f32 %v1446, %v1447
          %v1449 = vrot.slane %v1448, 4
          %v1450 = vmax.f32 %v1448, %v1449
          %v1451 = vrot.slane %v1450, 2
          %v1452 = vmax.f32 %v1450, %v1451
          %v1453 = vrot.slane %v1452, 1
          %v1454 = vmax.f32 %v1452, %v1453
          %v1455 = vsel %vm1445, %v1443, -inf
          %v1456 = vsel %vm1445, %v1444, -inf
          %v1457 = vmax.f32 %v1455, %v1456
          %v1458 = vrot.slane %v1457, 4
          %v1459 = vmax.f32 %v1457, %v1458
          %v1460 = vrot.slane %v1459, 2
          %v1461 = vmax.f32 %v1459, %v1460
          %v1462 = vrot.slane %v1461, 1
          %v1463 = vmax.f32 %v1461, %v1462
          %v1470 = vrot.slane %v1205, 1
          %v1471 = vrot.slane %v1207, 1
          %v1472 = vsel %vm1237, %v1470, %v1471
          %v1473 = vrot.slane %v1209, 1
          %v1474 = vsel %vm1237, %v1471, %v1473
          %v1475 = vrot.slane %v1211, 1
          %v1476 = vrot.slane %v1213, 1
          %v1477 = vsel %vm1237, %v1475, %v1476
          %v1478 = vrot.slane %v1215, 1
          %v1479 = vsel %vm1237, %v1476, %v1478
          %1480 = vrot.lane.b32.xlu0 %v1472, 64
          %v1481 = vpop.permute.xlu0 %1480
          %1482 = vrot.lane.b32.xlu0 %v1474, 64
          %v1483 = vpop.permute.xlu0 %1482
          %1484 = vrot.lane.b32.xlu0 %v1477, 64
          %v1485 = vpop.permute.xlu0 %1484
          %1486 = vrot.lane.b32.xlu0 %v1479, 64
          %v1487 = vpop.permute.xlu0 %1486
          %v1492 = vadd.f32 %v1205, %v1481
          %v1493 = vadd.f32 %v1207, %v1483
          %v1494 = vadd.f32 %v1211, %v1485
          %v1495 = vadd.f32 %v1213, %v1487
          %v1502 = vrot.slane %v1206, 2
          %v1503 = vrot.slane %v1208, 2
          %v1504 = vsel %vm1270, %v1502, %v1503
          %v1505 = vrot.slane %v1210, 2
          %v1506 = vsel %vm1270, %v1503, %v1505
          %v1507 = vrot.slane %v1212, 2
          %v1508 = vrot.slane %v1214, 2
          %v1509 = vsel %vm1270, %v1507, %v1508
          %v1510 = vrot.slane %v1216, 2
          %v1511 = vsel %vm1270, %v1508, %v1510
          %v1516 = vadd.f32 %v1492, %v1504
          %v1517 = vadd.f32 %v1493, %v1506
          %v1518 = vadd.f32 %v1494, %v1509
          %v1519 = vadd.f32 %v1495, %v1511
          %v1520 = vrot.slane %v1206, 3
          %v1521 = vrot.slane %v1208, 3
          %v1522 = vsel %vm1378, %v1520, %v1521
          %v1523 = vrot.slane %v1210, 3
          %v1524 = vsel %vm1378, %v1521, %v1523
          %v1525 = vrot.slane %v1212, 3
          %v1526 = vrot.slane %v1214, 3
          %v1527 = vsel %vm1378, %v1525, %v1526
          %v1528 = vrot.slane %v1216, 3
          %v1529 = vsel %vm1378, %v1526, %v1528
          %1530 = vrot.lane.b32.xlu0 %v1522, 64
          %v1531 = vpop.permute.xlu0 %1530
          %1532 = vrot.lane.b32.xlu0 %v1524, 64
          %v1533 = vpop.permute.xlu0 %1532
          %1534 = vrot.lane.b32.xlu0 %v1527, 64
          %v1535 = vpop.permute.xlu0 %1534
          %1536 = vrot.lane.b32.xlu0 %v1529, 64
          %v1537 = vpop.permute.xlu0 %1536
          %v1542 = vadd.f32 %v1516, %v1531
          %v1543 = vadd.f32 %v1517, %v1533
          %v1544 = vadd.f32 %v1518, %v1535
          %v1545 = vadd.f32 %v1519, %v1537
          %v1552 = vrot.slane %v1218, 4
          %v1553 = vrot.slane %v1220, 4
          %v1554 = vsel %vm1405, %v1552, %v1553
          %v1555 = vrot.slane %v1222, 4
          %v1556 = vsel %vm1405, %v1553, %v1555
          %v1557 = vrot.slane %v1224, 4
          %v1558 = vrot.slane %v1226, 4
          %v1559 = vsel %vm1405, %v1557, %v1558
          %v1560 = vrot.slane %v1228, 4
          %v1561 = vsel %vm1405, %v1558, %v1560
          %v1566 = vadd.f32 %v1542, %v1554
          %v1567 = vadd.f32 %v1543, %v1556
          %v1568 = vadd.f32 %v1544, %v1559
          %v1569 = vadd.f32 %v1545, %v1561
          %vm1570 = vcmask 1042432
          %v1571 = vrot.slane %v1218, 5
          %v1572 = vrot.slane %v1220, 5
          %v1573 = vsel %vm1570, %v1571, %v1572
          %v1574 = vrot.slane %v1222, 5
          %v1575 = vsel %vm1570, %v1572, %v1574
          %v1576 = vrot.slane %v1224, 5
          %v1577 = vrot.slane %v1226, 5
          %v1578 = vsel %vm1570, %v1576, %v1577
          %v1579 = vrot.slane %v1228, 5
          %v1580 = vsel %vm1570, %v1577, %v1579
          %1581 = vrot.lane.b32.xlu0 %v1573, 64
          %v1582 = vpop.permute.xlu0 %1581
          %1583 = vrot.lane.b32.xlu0 %v1575, 64
          %v1584 = vpop.permute.xlu0 %1583
          %1585 = vrot.lane.b32.xlu0 %v1578, 64
          %v1586 = vpop.permute.xlu0 %1585
          %1587 = vrot.lane.b32.xlu0 %v1580, 64
          %v1588 = vpop.permute.xlu0 %1587
          %v1593 = vadd.f32 %v1566, %v1582
          %v1594 = vadd.f32 %v1567, %v1584
          %v1595 = vadd.f32 %v1568, %v1586
          %v1596 = vadd.f32 %v1569, %v1588
          %vm1603 = vcmask 1041408
          %v1604 = vrot.slane %v1219, 6
          %v1605 = vrot.slane %v1221, 6
          %v1606 = vsel %vm1603, %v1604, %v1605
          %v1607 = vrot.slane %v1223, 6
          %v1608 = vsel %vm1603, %v1605, %v1607
          %v1609 = vrot.slane %v1225, 6
          %v1610 = vrot.slane %v1227, 6
          %v1611 = vsel %vm1603, %v1609, %v1610
          %v1612 = vrot.slane %v1229, 6
          %v1613 = vsel %vm1603, %v1610, %v1612
          %v1618 = vadd.f32 %v1593, %v1606
          %v1619 = vadd.f32 %v1594, %v1608
          %v1620 = vadd.f32 %v1595, %v1611
          %v1621 = vadd.f32 %v1596, %v1613
          %v1622 = vrot.slane %v1230, 1
          %v1623 = vlaneseq
          %v1624 = vshrl.u32 %v1623, 7
          %v1625 = vsub.s32 0, %v1624
          %v1626 = vrot.slane %v1622, %v1625
          %v1628 = vadd.f32 %v1618, %v1626
          %v1629 = vadd.f32 %v1619, %v1626
          %v1630 = vadd.f32 %v1620, %v1626
          %v1631 = vadd.f32 %v1621, %v1626
          %v1632 = vmax.f32 %v1628, 0.0
          %v1633 = vmax.f32 %v1629, 0.0
          %v1634 = vmax.f32 %v1630, 0.0
          %v1635 = vmax.f32 %v1631, 0.0
          %vm1636 = vcmp.lt.s32.totalorder %v1433, 12
          %vm1637 = vcmp.lt.s32.totalorder %v1434, 12
          %v1638 = vsel %vm1636, 1, 0
          %v1639 = vsel %vm1637, 1, 0
          %vm1640 = vcmp.eq.s32.totalorder %v1638, 1
          %vm1641 = vcmp.eq.s32.totalorder %v1639, 1
          %v1642 = vsel %vm1640, %v1632, 0.0
          %v1643 = vsel %vm1641, %v1633, 0.0
          %v1644 = vsel %vm1640, %v1634, 0.0
          %v1645 = vsel %vm1641, %v1635, 0.0
          %v1646 = vsel %vm1303, %v1642, -inf
          %v1647 = vsel %vm1303, %v1643, -inf
          %v1648 = vmax.f32 %v1646, %v1647
          %v1649 = vrot.slane %v1648, 4
          %v1650 = vmax.f32 %v1648, %v1649
          %v1651 = vrot.slane %v1650, 2
          %v1652 = vmax.f32 %v1650, %v1651
          %v1653 = vrot.slane %v1652, 1
          %v1654 = vmax.f32 %v1652, %v1653
          %v1655 = vsel %vm1303, %v1644, -inf
          %v1656 = vsel %vm1303, %v1645, -inf
          %v1657 = vmax.f32 %v1655, %v1656
          %v1658 = vrot.slane %v1657, 4
          %v1659 = vmax.f32 %v1657, %v1658
          %v1660 = vrot.slane %v1659, 2
          %v1661 = vmax.f32 %v1659, %v1660
          %v1662 = vrot.slane %v1661, 1
          %v1663 = vmax.f32 %v1661, %v1662
          %vm1666 = vcmask 1041409
          %v1667 = vsel %vm1666, %v1321, %v1312
          %v1671 = vsel %vm1666, %v1463, %v1454
          %v1675 = vsel %vm1666, %v1663, %v1654
          %v1677 = vsel %vm1303, %v1667, %v1671
          %v1678 = vpack.c.bf16 %v1677, %v1677
          %v1679 = vpack.c.bf16 %v1675, %v1675
          %v1680 = vld [vmem:[#allocation9] sm:$0xf]
          %v1681 = vld [vmem:[#allocation9 + $0x4] sm:$0xf]
          %v1682 = vld [vmem:[#allocation9 + $0x8] sm:$0xf]
          %v1683 = vld [vmem:[#allocation9 + $0xc] sm:$0xf]
          %v1684 = vld [vmem:[#allocation9 + $0x10] sm:$0xf]
          %v1685 = vld [vmem:[#allocation9 + $0x14] sm:$0xf]
          %v1686 = vld [vmem:[#allocation9 + $0x18] sm:$0xf]
          %v1687 = vld [vmem:[#allocation9 + $0x1c] sm:$0xf]
          %v1688 = vld [vmem:[#allocation9 + $0x20] sm:$0xf]
          %v1689 = vld [vmem:[#allocation9 + $0x24] sm:$0xf]
          %v1690 = vld [vmem:[#allocation9 + $0x28] sm:$0xf]
          %v1691 = vld [vmem:[#allocation9 + $0x2c] sm:$0xf]
          %v1692 = vld [vmem:[#allocation9 + $0x30] sm:$0xf]
          %v1693 = vld [vmem:[#allocation9 + $0x34] sm:$0xf]
          %v1694 = vld [vmem:[#allocation9 + $0x38] sm:$0xf]
          %v1695 = vld [vmem:[#allocation9 + $0x3c] sm:$0xf]
          %v1696 = vld [vmem:[#allocation9 + $0x40] sm:$0xf]
          %v1697 = vld [vmem:[#allocation9 + $0x44] sm:$0xf]
          %v1698 = vld [vmem:[#allocation9 + $0x48] sm:$0xf]
          %v1699 = vld [vmem:[#allocation9 + $0x4c] sm:$0xf]
          %v1700 = vld [vmem:[#allocation9 + $0x50] sm:$0xf]
          %v1701 = vld [vmem:[#allocation9 + $0x54] sm:$0xf]
          %v1702 = vld [vmem:[#allocation9 + $0x58] sm:$0xf]
          %v1703 = vld [vmem:[#allocation9 + $0x5c] sm:$0xf]
          %v1704 = vld [vmem:[#allocation11] sm:$0x1]
          %v1706 = vlaneseq
          %v1707 = vshrl.u32 %v1706, 7
          %v1708 = vsub.s32 0, %v1707
          %v1709 = vrot.slane %v1704, %v1708
          %v1735 = vunpack.c.l.b16 %v1680
          %v1736 = vunpack.c.l.b16 %v1681
          %v1737 = vunpack.c.l.b16 %v1682
          %v1738 = vunpack.c.l.b16 %v1683
          %v1739 = vunpack.c.l.b16 %v1684
          %v1740 = vunpack.c.l.b16 %v1685
          %v1741 = vunpack.c.l.b16 %v1686
          %v1742 = vunpack.c.l.b16 %v1687
          %v1743 = vunpack.c.l.b16 %v1688
          %v1744 = vunpack.c.l.b16 %v1689
          %v1745 = vunpack.c.l.b16 %v1690
          %v1746 = vunpack.c.l.b16 %v1691
          %v1747 = vunpack.c.l.b16 %v1692
          %v1748 = vunpack.c.l.b16 %v1693
          %v1749 = vunpack.c.l.b16 %v1694
          %v1750 = vunpack.c.l.b16 %v1695
          %v1751 = vunpack.c.l.b16 %v1696
          %v1752 = vunpack.c.l.b16 %v1697
          %v1753 = vunpack.c.l.b16 %v1698
          %v1754 = vunpack.c.l.b16 %v1699
          %v1755 = vunpack.c.l.b16 %v1700
          %v1756 = vunpack.c.l.b16 %v1701
          %v1757 = vunpack.c.l.b16 %v1702
          %v1758 = vunpack.c.l.b16 %v1703
          %v1759 = vpack.c.b16 %v1736, %v1735
          %v1760 = vpack.c.b16 %v1738, %v1737
          %v1761 = vpack.c.b16 %v1740, %v1739
          %v1762 = vpack.c.b16 %v1742, %v1741
          %v1763 = vpack.c.b16 %v1744, %v1743
          %v1764 = vpack.c.b16 %v1746, %v1745
          %v1765 = vpack.c.b16 %v1748, %v1747
          %v1766 = vpack.c.b16 %v1750, %v1749
          %v1767 = vpack.c.b16 %v1752, %v1751
          %v1768 = vpack.c.b16 %v1754, %v1753
          %v1769 = vpack.c.b16 %v1756, %v1755
          %v1770 = vpack.c.b16 %v1758, %v1757
          %v1784 = vsel %vm1303, %v1679, 0
          %1786 = vmatprep.subr.bf16.mxu0 0
          %1787 = vmatpush1.bf16.msra.mxu0 %v1759
          %1788 = vmatprep.subr.bf16.mxu0 0
          %1789 = vmatpush1.bf16.msra.mxu0 %v1760
          %1790 = vmatprep.subr.bf16.mxu0 0
          %1791 = vmatpush1.bf16.msra.mxu0 %v1761
          %1792 = vmatprep.subr.bf16.mxu0 0
          %1793 = vmatpush1.bf16.msra.mxu0 %v1762
          %1794 = vmatprep.subr.bf16.mxu0 0
          %1795 = vmatpush1.bf16.msra.mxu0 %v1763
          %1796 = vmatprep.subr.bf16.mxu0 0
          %1797 = vmatpush1.bf16.msra.mxu0 %v1764
          %1798 = vmatprep.subr.bf16.mxu0 0
          %1799 = vmatpush1.bf16.msra.mxu0 %v1765
          %1800 = vmatprep.subr.bf16.mxu0 0
          %1801 = vmatpush1.bf16.msra.mxu0 %v1766
          %1802 = vmatprep.subr.bf16.mxu0 0
          %1803 = vmatpush1.bf16.msra.mxu0 %v1767
          %1804 = vmatprep.subr.bf16.mxu0 0
          %1805 = vmatpush1.bf16.msra.mxu0 %v1768
          %1806 = vmatprep.subr.bf16.mxu0 0
          %1807 = vmatpush1.bf16.msra.mxu0 %v1769
          %1808 = vmatprep.subr.bf16.mxu0 0
          %1809 = vmatpush1.bf16.msra.mxu0 %v1770
          %1810 = vmatprep.subr.bf16.mxu0 0
          %1811 = vmatpush1.bf16.msra.mxu0 0
          %1812 = vmatprep.subr.bf16.mxu0 0
          %1813 = vmatpush1.bf16.msra.mxu0 0
          %1814 = vmatprep.subr.bf16.mxu0 0
          %1815 = vmatpush1.bf16.msra.mxu0 0
          %1816 = vmatprep.subr.bf16.mxu0 0
          %1817 = vmatpush1.bf16.msra.mxu0 0
          %1818 = vmatprep.mubr.bf16.mxu0 %v1784
          %1819 = vmatmul.mubr.bf16.gmra.mrb[0].mxu0 %v1678
          %v1820 = vpop.f32.mrb[0].mxu0
          %v1821 = vadd.f32 %v1709, %v1820
          %v1822 = vpop.f32.mrb[0].mxu0
          %v1823 = vpop.f32.mrb[0].mxu0
          %v1824 = vpop.f32.mrb[0].mxu0
          %1825 = vdwg.mxu0
          %1826 = vst [vmem:[#allocation12] sm:$0x3] %v1821
        $region64: #{tpu_custom_call.1} parent=39 // pred_fallthru
          _
        // Predicated region
        $region65: #{tpu_custom_call.1} parent=39 // pred_check
          %p1827 = pneg %p145
        $region66: #{tpu_custom_call.1} parent=39 // pred_check_branch
          %1829 = sbr.rel (%p1827) target = $region68
        $region67: #{tpu_custom_call.1} parent=39 // pred_region
          %s1831 = ssub.s32 32, 32
          %1832 = vsyncadd [#allocation5], %s1831
          %s1834 = sshll.u32 [#allocation12], 4
          %s1835 = int_to_ptr.vmem [resolvable:$true] %s1834
          %1837 = dma.vmem_to_hbm [thread:$0]  %s1835, 32, %s5, [#allocation5]
        $region68: #{tpu_custom_call.1} parent=39 // pred_fallthru
          _
        // Predicated region
        $region69: #{tpu_custom_call.1} parent=39 // pred_check
          %p1838 = pneg %p145
        $region70: #{tpu_custom_call.1} parent=39 // pred_check_branch
          %1840 = sbr.rel (%p1838) target = $region72
        $region71: #{tpu_custom_call.1} parent=39 // pred_region
          %1841 = dma.done [#allocation5], 32
        $region72: #{tpu_custom_call.1} parent=39 // pred_fallthru
          _
      $region40: #{tpu_custom_call.1} parent=5 // pred_fallthru
        _
      %p1842 = scmp.le.s32.totalorder 2, %s17
      // Predicated region
      $region73: #{tpu_custom_call.1} parent=5 // pred_check
        %p1843 = pneg %p1842
      $region74: #{tpu_custom_call.1} parent=5 // pred_check_branch
        %1845 = sbr.rel (%p1843) target = $region76
      $region75: #{tpu_custom_call.1} parent=5 // pred_region
        %s1846 = ssub.s32 %s17, 2
      $region76: #{tpu_custom_call.1} parent=5 // pred_fallthru
        _
    $region6: #{tpu_custom_call.1} parent=1 // loop_footer
      %s21 = sadd.s32 1, %s17
    $region7: #{tpu_custom_call.1} parent=1 // loop_footer_branch
      %16 = sbr.rel target = $region3
    $region8: #{tpu_custom_call.1} parent=1 // loop_exit
      _
    %1847 = vsyncpa [#allocation4], 1
    %s1848 = scalar_lea.sflag [#allocation4], 1
    %1849 = vsyncpa %s1848, 1
    %1850 = vsyncpa [#allocation7], 1
    %s1851 = scalar_lea.sflag [#allocation7], 1
    %1852 = vsyncpa %s1851, 1
    %1853 = vsyncpa [#allocation10], 1
    %1854 = vsyncpa [#allocation5], 1
    %s1855 = scalar_lea.sflag [#allocation5], 1
    %1856 = vsyncpa %s1855, 1

</llo_original>
